<compile_context>
chip_gen: v5e
topology: v5e:2x2
jax: 0.10.0
libtpu: 0.0.40
codegen_flags: <defaults>
</compile_context>

<pallas_src>
import math

import jax
import jax.numpy as jnp
import numpy as np
from jax import lax
from jax.experimental import pallas as pl
from jax.experimental.pallas import tpu as pltpu

ROWS = 8  # batch rows per grid block (fills MXU sublanes / LHS rows)


# ----------------------------------------------------------------------------
# Fused kernel
# ----------------------------------------------------------------------------
def _fused_kernel(x_ref,
                  w1x_ref, w1r_ref, b1_ref,
                  w2x_ref, w2r_ref, b2_ref,
                  fc1w_ref, fc1sb_ref, fc2w_ref, fc2b_ref,
                  gmask_ref,
                  out_ref,
                  gx_ref, h_ref):
    T8 = gx_ref.shape[0]
    T = T8 // ROWS
    H = w1r_ref.shape[0] // 2            # hidden size per direction
    H2, H4, H8 = 2 * H, 4 * H, 8 * H

    fwd_mask = gmask_ref[0:1, :]          # (1, 8H) : 1.0 on fwd gate columns
    bwd_mask = gmask_ref[1:2, :]

    def bf16(v):
        return v.astype(jnp.bfloat16)

    def cell(g, c):
        # g: (ROWS, 8H) pre-activations in gate-grouped layout
        #    [ i_f i_b | f_f f_b | g_f g_b | o_f o_b ]   (each chunk H wide)
        # i/f/o columns were pre-scaled by 0.5 at init so that
        #    sigmoid(a) == 0.5 * tanh(0.5 * a) + 0.5
        # which lets every gate nonlinearity ride on ONE tanh over 8H lanes.
        t = jnp.tanh(g)
        u = 0.5 * t + 0.5
        i = u[:, 0:H2]
        f = u[:, H2:H4]
        gg = t[:, H4:H4 + H2]
        o = u[:, H4 + H2:H8]
        c_new = f * c + i * gg
        h_new = o * jnp.tanh(c_new)
        return h_new, c_new

    def run_layer(gate_val, wr_ref, col_off):
        # gate_val: (T*ROWS, 8H) f32, x-part of the gates (+bias), time-major
        # row blocks, gate-grouped columns.  Build the time-ALIGNED buffer once:
        # row-block s = fwd x-gates of time s + bwd x-gates of time T-1-s, so the
        # serial recurrence does exactly one lane-dense load and one add per step.
        for s in range(T):
            r, rr = s * ROWS, (T - 1 - s) * ROWS
            gx_ref[r:r + ROWS, :] = (gate_val[r:r + ROWS, :] * fwd_mask
                                     + gate_val[rr:rr + ROWS, :] * bwd_mask)

        wr = wr_ref[...]                                 # (2H, 8H) block-diagonal
        h_bf = jnp.zeros((ROWS, H2), jnp.bfloat16)       # [h_fwd | h_bwd]
        c = jnp.zeros((ROWS, H2), jnp.float32)           # [c_fwd | c_bwd]

        # TODO(synk): for long sequences switch to a partially-unrolled
        # lax.fori_loop (unroll=4..8) with pl.ds indexing; the fully static
        # unroll below targets small T.
        for s in range(T):
            r, rr = s * ROWS, (T - 1 - s) * ROWS
            # ONE fused MXU op per step for both directions.
            rec = jnp.dot(h_bf, wr, preferred_element_type=jnp.float32)
            g = gx_ref[r:r + ROWS, :] + rec
            h, c = cell(g, c)
            h_bf = bf16(h)
            # fwd hidden of time s, bwd hidden of time T-1-s.
            h_ref[r:r + ROWS, col_off:col_off + H] = h[:, 0:H]
            h_ref[rr:rr + ROWS, col_off + H:col_off + H2] = h[:, H:H2]

    # ---- bi-LSTM layer 1 ----------------------------------------------------
    gate1 = (jnp.dot(bf16(x_ref[...]), w1x_ref[...],
                     preferred_element_type=jnp.float32) + b1_ref[...])
    run_layer(gate1, w1r_ref, 0)

    # ---- bi-LSTM layer 2: input [o1_fwd | o1_bwd] -> ONE K=2H matmul ---------
    gate2 = (jnp.dot(bf16(h_ref[:, 0:H2]), w2x_ref[...],
                     preferred_element_type=jnp.float32) + b2_ref[...])
    run_layer(gate2, w2r_ref, H2)

    # ---- fc1 (Linear + folded eval BatchNorm1d) + ReLU, then fc2 -------------
    z = bf16(h_ref[...])                                  # (T*ROWS, 4H) [o1f|o1b|o2f|o2b]
    h1 = jnp.dot(z, fc1w_ref[...], preferred_element_type=jnp.float32)
    h1 = jnp.maximum(h1 * fc1sb_ref[0:1, :] + fc1sb_ref[1:2, :], 0.0)
    out_ref[...] = (jnp.dot(bf16(h1), fc2w_ref[...],
                            preferred_element_type=jnp.float32) + fc2b_ref[...])


# ----------------------------------------------------------------------------
# Weight preparation (canonical PyTorch-like params -> kernel layout)
# ----------------------------------------------------------------------------
def _gate_layout(wf, wb, H):
    """Interleave fwd/bwd per gate group -> [i_f i_b f_f f_b g_f g_b o_f o_b].
    i/f/o columns pre-scaled by 0.5 (sigmoid-as-tanh fold)."""
    chunks = []
    for k in range(4):                       # PyTorch gate order: i, f, g, o
        sc = 1.0 if k == 2 else 0.5
        chunks.append(wf[..., k * H:(k + 1) * H] * sc)
        chunks.append(wb[..., k * H:(k + 1) * H] * sc)
    return jnp.concatenate(chunks, axis=-1)


def _prepare_layer(lp, H):
    wx = _gate_layout(lp["w_ih_f"], lp["w_ih_b"], H)                      # (Din, 8H)
    wr_top = _gate_layout(lp["w_hh_f"], jnp.zeros_like(lp["w_hh_f"]), H)  # (H, 8H)
    wr_bot = _gate_layout(jnp.zeros_like(lp["w_hh_b"]), lp["w_hh_b"], H)  # (H, 8H)
    wr = jnp.concatenate([wr_top, wr_bot], axis=0)                        # block-diag (2H, 8H)
    b = _gate_layout(lp["b_f"], lp["b_b"], H)                             # (1, 8H)
    return wx.astype(jnp.bfloat16), wr.astype(jnp.bfloat16), b.astype(jnp.float32)


def _prepare_kernel_args(params):
    H = params["l1"]["w_hh_f"].shape[0]
    w1x, w1r, b1 = _prepare_layer(params["l1"], H)
    w2x, w2r, b2 = _prepare_layer(params["l2"], H)
    fc1sb = jnp.concatenate([params["fc1_scale"], params["fc1_bias"]], axis=0)   # (2, F1)
    fwd = jnp.tile(jnp.concatenate([jnp.ones((H,), jnp.float32),
                                    jnp.zeros((H,), jnp.float32)]), 4)[None, :]  # (1, 8H)
    gmask = jnp.concatenate([fwd, 1.0 - fwd], axis=0)                            # (2, 8H)
    return (w1x, w1r, b1, w2x, w2r, b2,
            params["fc1_w"].astype(jnp.bfloat16), fc1sb,
            params["fc2_w"].astype(jnp.bfloat16), params["fc2_b"], gmask), H


# ----------------------------------------------------------------------------
# Wrapper
# ----------------------------------------------------------------------------
def pallas_forward(x, params):
    B, T, D = x.shape
    weights, H = _prepare_kernel_args(params)
    C = params["fc2_w"].shape[1]

    G = (B + ROWS - 1) // ROWS
    Bp = G * ROWS
    T8 = T * ROWS

    # Time-major packing: row = t*ROWS + r within each batch block of ROWS sequences.
    xt = jnp.transpose(x, (1, 0, 2))                            # (T, B, D)
    xt = jnp.pad(xt, ((0, 0), (0, Bp - B), (0, 0)))             # pad batch -> full sublanes
    xt = xt.reshape(T, G, ROWS, D).transpose(1, 0, 2, 3).reshape(G, T8, D)

    def full_spec(a):
        nd = a.ndim
        return pl.BlockSpec(a.shape, lambda g, _nd=nd: (0,) * _nd)

    out = pl.pallas_call(
        _fused_kernel,
        out_shape=jax.ShapeDtypeStruct((G, T8, C), jnp.float32),
        grid=(G,),
        in_specs=[pl.BlockSpec((None, T8, D), lambda g: (g, 0, 0))]
                 + [full_spec(a) for a in weights],
        out_specs=pl.BlockSpec((None, T8, C), lambda g: (g, 0, 0)),
        scratch_shapes=[
            pltpu.VMEM((T8, 8 * H), jnp.float32),   # time-aligned x-gates (reused per layer)
            pltpu.VMEM((T8, 4 * H), jnp.float32),   # hidden outputs [o1f|o1b|o2f|o2b]
        ],
        compiler_params=pltpu.CompilerParams(
            dimension_semantics=("parallel",),       # batch blocks -> both TCs on v7x
        ),
    )(xt, *weights)

    out = out.reshape(G, T, ROWS, C).transpose(0, 2, 1, 3).reshape(Bp, T, C)[:B]
    if B == 1:
        return out[0]            # mirror torch.squeeze for the module's B == 1 case
    return out


# ----------------------------------------------------------------------------
# Pure-JAX reference (vanilla gate math; bf16 matmul operands to match kernel)
# ----------------------------------------------------------------------------
def _bilstm_ref(x, lp):
    H = lp["w_hh_f"].shape[0]

    def run_dir(xs, w_ih, w_hh, b):
        gx = jnp.dot(xs.astype(jnp.bfloat16), w_ih.astype(jnp.bfloat16),
                     preferred_element_type=jnp.float32) + b          # (T, B, 4H)

        def step(carry, g_t):
            h, c = carry
            g = g_t + jnp.dot(h.astype(jnp.bfloat16), w_hh.astype(jnp.bfloat16),
                              preferred_element_type=jnp.float32)
            i = jax.nn.sigmoid(g[:, 0:H])
            f = jax.nn.sigmoid(g[:, H:2 * H])
            gg = jnp.tanh(g[:, 2 * H:3 * H])
            o = jax.nn.sigmoid(g[:, 3 * H:4 * H])
            c = f * c + i * gg
            h = o * jnp.tanh(c)
            return (h, c), h

        Bsz = xs.shape[1]
        h0 = jnp.zeros((Bsz, H), jnp.float32)
        _, hs = lax.scan(step, (h0, h0), gx)
        return hs                                                     # (T, B, H)

    xt = jnp.transpose(x, (1, 0, 2))
    hf = run_dir(xt, lp["w_ih_f"], lp["w_hh_f"], lp["b_f"])
    hb = run_dir(xt[::-1], lp["w_ih_b"], lp["w_hh_b"], lp["b_b"])[::-1]
    return jnp.concatenate([hf, hb], axis=-1).transpose(1, 0, 2)      # (B, T, 2H)


def reference_forward(x, params):
    out1 = _bilstm_ref(x, params["l1"])
    out2 = _bilstm_ref(out1, params["l2"])
    z = jnp.concatenate([out1, out2], axis=-1)                        # (B, T, 4H)
    h1 = jnp.dot(z.astype(jnp.bfloat16), params["fc1_w"].astype(jnp.bfloat16),
                 preferred_element_type=jnp.float32)
    h1 = jnp.maximum(h1 * params["fc1_scale"] + params["fc1_bias"], 0.0)
    out = (jnp.dot(h1.astype(jnp.bfloat16), params["fc2_w"].astype(jnp.bfloat16),
                   preferred_element_type=jnp.float32) + params["fc2_b"])
    return out[0] if x.shape[0] == 1 else out


# ----------------------------------------------------------------------------
# Deterministic parameter construction (shapes follow LSTMnet_2layers.__init__)
# ----------------------------------------------------------------------------
def init_params(key, input_dim, hidden_dim, num_classes, lstm_layer=2):
    H = hidden_dim
    F1 = hidden_dim * lstm_layer
    ki = iter(jax.random.split(key, 40))

    def rnd(shape, scale):
        return scale * jax.random.normal(next(ki), shape, jnp.float32)

    def lstm_layer_params(din):
        s = 1.0 / math.sqrt(H)
        return {
            "w_ih_f": rnd((din, 4 * H), s), "w_hh_f": rnd((H, 4 * H), s),
            "b_f": rnd((1, 4 * H), s),          # b_ih + b_hh folded
            "w_ih_b": rnd((din, 4 * H), s), "w_hh_b": rnd((H, 4 * H), s),
            "b_b": rnd((1, 4 * H), s),
        }

    l1 = lstm_layer_params(input_dim)
    l2 = lstm_layer_params(2 * H)

    # fc1 = Linear(4H, F1) -> BatchNorm1d(F1) (eval) -> ReLU, folded to scale/bias.
    s1 = 1.0 / math.sqrt(4 * H)
    fc1_w = rnd((4 * H, F1), s1)
    fc1_b = rnd((1, F1), s1)
    gamma = 1.0 + 0.1 * rnd((1, F1), 1.0)
    beta = 0.1 * rnd((1, F1), 1.0)
    rmean = 0.1 * rnd((1, F1), 1.0)
    rvar = 1.0 + jax.random.uniform(next(ki), (1, F1), jnp.float32)
    scale = gamma / jnp.sqrt(rvar + 1e-5)
    bias = beta + (fc1_b - rmean) * scale

    s2 = 1.0 / math.sqrt(F1)
    return {
        "l1": l1, "l2": l2,
        "fc1_w": fc1_w, "fc1_scale": scale, "fc1_bias": bias,
        "fc2_w": rnd((F1, num_classes), s2), "fc2_b": rnd((1, num_classes), s2),
    }


if __name__ == "__main__":
    key = jax.random.PRNGKey(0)
    pkey, xkey = jax.random.split(key)

    # Small shapes consistent with the module: seq=8, input_dim=16, hidden=32
    # per direction, lstm_layer=2, num_classes=8; batch=4 independent sequences.
    B, T = 4, 8
    input_dim, hidden_dim, num_classes = 16, 32, 8

    params = init_params(pkey, input_dim, hidden_dim, num_classes)
    x = jax.random.normal(xkey, (B, T, input_dim), jnp.float32)

    out = jax.block_until_ready(jax.jit(pallas_forward)(x, params))
    ref = jax.block_until_ready(jax.jit(reference_forward)(x, params))

    assert out.shape == (B, T, num_classes), out.shape
    np.testing.assert_allclose(np.asarray(out), np.asarray(ref),
                               rtol=3e-2, atol=3e-2)

    # TODO(synk): training-mode Dropout (p=0.2) not implemented (eval identity).
    print("KERNEL_OK")
</pallas_src>

<mosaic_0001>
module attributes {stable_mosaic.version = 11 : i64} {
  func.func @_fused_kernel(%arg0: i32, %arg1: memref<1x64x16xf32, #tpu.memory_space<vmem>>, %arg2: memref<16x256xbf16, #tpu.memory_space<vmem>>, %arg3: memref<64x256xbf16, #tpu.memory_space<vmem>>, %arg4: memref<1x256xf32, #tpu.memory_space<vmem>>, %arg5: memref<64x256xbf16, #tpu.memory_space<vmem>>, %arg6: memref<64x256xbf16, #tpu.memory_space<vmem>>, %arg7: memref<1x256xf32, #tpu.memory_space<vmem>>, %arg8: memref<128x64xbf16, #tpu.memory_space<vmem>>, %arg9: memref<2x64xf32, #tpu.memory_space<vmem>>, %arg10: memref<64x8xbf16, #tpu.memory_space<vmem>>, %arg11: memref<1x8xf32, #tpu.memory_space<vmem>>, %arg12: memref<2x256xf32, #tpu.memory_space<vmem>>, %arg13: memref<1x64x8xf32, #tpu.memory_space<vmem>>, %arg14: memref<64x256xf32, #tpu.memory_space<vmem>>, %arg15: memref<64x128xf32, #tpu.memory_space<vmem>>) attributes {dimension_semantics = [#tpu.dimension_semantics<parallel>], iteration_bounds = array<i64: 1>, scalar_prefetch = 0 : i64, scratch_operands = 2 : i64, tpu.core_type = #tpu.core_type<tc>, window_params = [{transform_indices = @transform_0, window_bounds = array<i64: 1, 64, 16>}, {pipeline_mode = #tpu.pipeline_mode<synchronous>, transform_indices = @transform_1, window_bounds = array<i64: 16, 256>}, {pipeline_mode = #tpu.pipeline_mode<synchronous>, transform_indices = @transform_2, window_bounds = array<i64: 64, 256>}, {pipeline_mode = #tpu.pipeline_mode<synchronous>, transform_indices = @transform_3, window_bounds = array<i64: 1, 256>}, {pipeline_mode = #tpu.pipeline_mode<synchronous>, transform_indices = @transform_4, window_bounds = array<i64: 64, 256>}, {pipeline_mode = #tpu.pipeline_mode<synchronous>, transform_indices = @transform_5, window_bounds = array<i64: 64, 256>}, {pipeline_mode = #tpu.pipeline_mode<synchronous>, transform_indices = @transform_6, window_bounds = array<i64: 1, 256>}, {pipeline_mode = #tpu.pipeline_mode<synchronous>, transform_indices = @transform_7, window_bounds = array<i64: 128, 64>}, {pipeline_mode = #tpu.pipeline_mode<synchronous>, transform_indices = @transform_8, window_bounds = array<i64: 2, 64>}, {pipeline_mode = #tpu.pipeline_mode<synchronous>, transform_indices = @transform_9, window_bounds = array<i64: 64, 8>}, {pipeline_mode = #tpu.pipeline_mode<synchronous>, transform_indices = @transform_10, window_bounds = array<i64: 1, 8>}, {pipeline_mode = #tpu.pipeline_mode<synchronous>, transform_indices = @transform_11, window_bounds = array<i64: 2, 256>}, {transform_indices = @transform_12, window_bounds = array<i64: 1, 64, 8>}]} {
    %c0 = arith.constant 0 : index
    %c0_0 = arith.constant 0 : index
    %0 = vector.load %arg12[%c0, %c0_0] : memref<2x256xf32, #tpu.memory_space<vmem>>, vector<1x256xf32>
    %c1 = arith.constant 1 : index
    %c0_1 = arith.constant 0 : index
    %1 = vector.load %arg12[%c1, %c0_1] : memref<2x256xf32, #tpu.memory_space<vmem>>, vector<1x256xf32>
    %c0_2 = arith.constant 0 : index
    %c0_3 = arith.constant 0 : index
    %c0_4 = arith.constant 0 : index
    %2 = vector.load %arg1[%c0_2, %c0_3, %c0_4] : memref<1x64x16xf32, #tpu.memory_space<vmem>>, vector<1x64x16xf32>
    %3 = vector.shape_cast %2 : vector<1x64x16xf32> to vector<64x16xf32>
    %4 = arith.truncf %3 : vector<64x16xf32> to vector<64x16xbf16>
    %c0_5 = arith.constant 0 : index
    %c0_6 = arith.constant 0 : index
    %5 = vector.load %arg2[%c0_5, %c0_6] : memref<16x256xbf16, #tpu.memory_space<vmem>>, vector<16x256xbf16>
    %cst = arith.constant dense<0.000000e+00> : vector<64x256xf32>
    %6 = tpu.matmul %4, %5, %cst {dimension_numbers = #tpu.dot_dimension_numbers<[1], [0], [0], [1], [0, 0, 1, 1], [], []>} : vector<64x16xbf16>, vector<16x256xbf16>, vector<64x256xf32> -> vector<64x256xf32>
    %c0_7 = arith.constant 0 : index
    %c0_8 = arith.constant 0 : index
    %7 = vector.load %arg4[%c0_7, %c0_8] : memref<1x256xf32, #tpu.memory_space<vmem>>, vector<1x256xf32>
    %8 = vector.broadcast %7 : vector<1x256xf32> to vector<64x256xf32>
    %9 = arith.addf %6, %8 : vector<64x256xf32>
    %10 = vector.extract_strided_slice %9 {offsets = [0, 0], sizes = [8, 256], strides = [1, 1]} : vector<64x256xf32> to vector<8x256xf32>
    %11 = vector.broadcast %0 : vector<1x256xf32> to vector<8x256xf32>
    %12 = arith.mulf %10, %11 : vector<8x256xf32>
    %13 = vector.extract_strided_slice %9 {offsets = [56, 0], sizes = [8, 256], strides = [1, 1]} : vector<64x256xf32> to vector<8x256xf32>
    %14 = vector.broadcast %1 : vector<1x256xf32> to vector<8x256xf32>
    %15 = arith.mulf %13, %14 : vector<8x256xf32>
    %16 = arith.addf %12, %15 : vector<8x256xf32>
    %c0_9 = arith.constant 0 : index
    %c0_10 = arith.constant 0 : index
    %17 = vector.load %arg14[%c0_9, %c0_10] : memref<64x256xf32, #tpu.memory_space<vmem>>, vector<8x256xf32>
    tpu.vector_store %arg14[%c0_9, %c0_10], %16 {strides = array<i32>} : memref<64x256xf32, #tpu.memory_space<vmem>>, vector<8x256xf32>,
    %18 = vector.extract_strided_slice %9 {offsets = [8, 0], sizes = [8, 256], strides = [1, 1]} : vector<64x256xf32> to vector<8x256xf32>
    %19 = vector.broadcast %0 : vector<1x256xf32> to vector<8x256xf32>
    %20 = arith.mulf %18, %19 : vector<8x256xf32>
    %21 = vector.extract_strided_slice %9 {offsets = [48, 0], sizes = [8, 256], strides = [1, 1]} : vector<64x256xf32> to vector<8x256xf32>
    %22 = vector.broadcast %1 : vector<1x256xf32> to vector<8x256xf32>
    %23 = arith.mulf %21, %22 : vector<8x256xf32>
    %24 = arith.addf %20, %23 : vector<8x256xf32>
    %c8 = arith.constant 8 : index
    %c0_11 = arith.constant 0 : index
    %25 = vector.load %arg14[%c8, %c0_11] : memref<64x256xf32, #tpu.memory_space<vmem>>, vector<8x256xf32>
    tpu.vector_store %arg14[%c8, %c0_11], %24 {strides = array<i32>} : memref<64x256xf32, #tpu.memory_space<vmem>>, vector<8x256xf32>,
    %26 = vector.extract_strided_slice %9 {offsets = [16, 0], sizes = [8, 256], strides = [1, 1]} : vector<64x256xf32> to vector<8x256xf32>
    %27 = vector.broadcast %0 : vector<1x256xf32> to vector<8x256xf32>
    %28 = arith.mulf %26, %27 : vector<8x256xf32>
    %29 = vector.extract_strided_slice %9 {offsets = [40, 0], sizes = [8, 256], strides = [1, 1]} : vector<64x256xf32> to vector<8x256xf32>
    %30 = vector.broadcast %1 : vector<1x256xf32> to vector<8x256xf32>
    %31 = arith.mulf %29, %30 : vector<8x256xf32>
    %32 = arith.addf %28, %31 : vector<8x256xf32>
    %c16 = arith.constant 16 : index
    %c0_12 = arith.constant 0 : index
    %33 = vector.load %arg14[%c16, %c0_12] : memref<64x256xf32, #tpu.memory_space<vmem>>, vector<8x256xf32>
    tpu.vector_store %arg14[%c16, %c0_12], %32 {strides = array<i32>} : memref<64x256xf32, #tpu.memory_space<vmem>>, vector<8x256xf32>,
    %34 = vector.extract_strided_slice %9 {offsets = [24, 0], sizes = [8, 256], strides = [1, 1]} : vector<64x256xf32> to vector<8x256xf32>
    %35 = vector.broadcast %0 : vector<1x256xf32> to vector<8x256xf32>
    %36 = arith.mulf %34, %35 : vector<8x256xf32>
    %37 = vector.extract_strided_slice %9 {offsets = [32, 0], sizes = [8, 256], strides = [1, 1]} : vector<64x256xf32> to vector<8x256xf32>
    %38 = vector.broadcast %1 : vector<1x256xf32> to vector<8x256xf32>
    %39 = arith.mulf %37, %38 : vector<8x256xf32>
    %40 = arith.addf %36, %39 : vector<8x256xf32>
    %c24 = arith.constant 24 : index
    %c0_13 = arith.constant 0 : index
    %41 = vector.load %arg14[%c24, %c0_13] : memref<64x256xf32, #tpu.memory_space<vmem>>, vector<8x256xf32>
    tpu.vector_store %arg14[%c24, %c0_13], %40 {strides = array<i32>} : memref<64x256xf32, #tpu.memory_space<vmem>>, vector<8x256xf32>,
    %42 = vector.extract_strided_slice %9 {offsets = [32, 0], sizes = [8, 256], strides = [1, 1]} : vector<64x256xf32> to vector<8x256xf32>
    %43 = vector.broadcast %0 : vector<1x256xf32> to vector<8x256xf32>
    %44 = arith.mulf %42, %43 : vector<8x256xf32>
    %45 = vector.extract_strided_slice %9 {offsets = [24, 0], sizes = [8, 256], strides = [1, 1]} : vector<64x256xf32> to vector<8x256xf32>
    %46 = vector.broadcast %1 : vector<1x256xf32> to vector<8x256xf32>
    %47 = arith.mulf %45, %46 : vector<8x256xf32>
    %48 = arith.addf %44, %47 : vector<8x256xf32>
    %c32 = arith.constant 32 : index
    %c0_14 = arith.constant 0 : index
    %49 = vector.load %arg14[%c32, %c0_14] : memref<64x256xf32, #tpu.memory_space<vmem>>, vector<8x256xf32>
    tpu.vector_store %arg14[%c32, %c0_14], %48 {strides = array<i32>} : memref<64x256xf32, #tpu.memory_space<vmem>>, vector<8x256xf32>,
    %50 = vector.extract_strided_slice %9 {offsets = [40, 0], sizes = [8, 256], strides = [1, 1]} : vector<64x256xf32> to vector<8x256xf32>
    %51 = vector.broadcast %0 : vector<1x256xf32> to vector<8x256xf32>
    %52 = arith.mulf %50, %51 : vector<8x256xf32>
    %53 = vector.extract_strided_slice %9 {offsets = [16, 0], sizes = [8, 256], strides = [1, 1]} : vector<64x256xf32> to vector<8x256xf32>
    %54 = vector.broadcast %1 : vector<1x256xf32> to vector<8x256xf32>
    %55 = arith.mulf %53, %54 : vector<8x256xf32>
    %56 = arith.addf %52, %55 : vector<8x256xf32>
    %c40 = arith.constant 40 : index
    %c0_15 = arith.constant 0 : index
    %57 = vector.load %arg14[%c40, %c0_15] : memref<64x256xf32, #tpu.memory_space<vmem>>, vector<8x256xf32>
    tpu.vector_store %arg14[%c40, %c0_15], %56 {strides = array<i32>} : memref<64x256xf32, #tpu.memory_space<vmem>>, vector<8x256xf32>,
    %58 = vector.extract_strided_slice %9 {offsets = [48, 0], sizes = [8, 256], strides = [1, 1]} : vector<64x256xf32> to vector<8x256xf32>
    %59 = vector.broadcast %0 : vector<1x256xf32> to vector<8x256xf32>
    %60 = arith.mulf %58, %59 : vector<8x256xf32>
    %61 = vector.extract_strided_slice %9 {offsets = [8, 0], sizes = [8, 256], strides = [1, 1]} : vector<64x256xf32> to vector<8x256xf32>
    %62 = vector.broadcast %1 : vector<1x256xf32> to vector<8x256xf32>
    %63 = arith.mulf %61, %62 : vector<8x256xf32>
    %64 = arith.addf %60, %63 : vector<8x256xf32>
    %c48 = arith.constant 48 : index
    %c0_16 = arith.constant 0 : index
    %65 = vector.load %arg14[%c48, %c0_16] : memref<64x256xf32, #tpu.memory_space<vmem>>, vector<8x256xf32>
    tpu.vector_store %arg14[%c48, %c0_16], %64 {strides = array<i32>} : memref<64x256xf32, #tpu.memory_space<vmem>>, vector<8x256xf32>,
    %66 = vector.extract_strided_slice %9 {offsets = [56, 0], sizes = [8, 256], strides = [1, 1]} : vector<64x256xf32> to vector<8x256xf32>
    %67 = vector.broadcast %0 : vector<1x256xf32> to vector<8x256xf32>
    %68 = arith.mulf %66, %67 : vector<8x256xf32>
    %69 = vector.extract_strided_slice %9 {offsets = [0, 0], sizes = [8, 256], strides = [1, 1]} : vector<64x256xf32> to vector<8x256xf32>
    %70 = vector.broadcast %1 : vector<1x256xf32> to vector<8x256xf32>
    %71 = arith.mulf %69, %70 : vector<8x256xf32>
    %72 = arith.addf %68, %71 : vector<8x256xf32>
    %c56 = arith.constant 56 : index
    %c0_17 = arith.constant 0 : index
    %73 = vector.load %arg14[%c56, %c0_17] : memref<64x256xf32, #tpu.memory_space<vmem>>, vector<8x256xf32>
    tpu.vector_store %arg14[%c56, %c0_17], %72 {strides = array<i32>} : memref<64x256xf32, #tpu.memory_space<vmem>>, vector<8x256xf32>,
    %c0_18 = arith.constant 0 : index
    %c0_19 = arith.constant 0 : index
    %74 = vector.load %arg3[%c0_18, %c0_19] : memref<64x256xbf16, #tpu.memory_space<vmem>>, vector<64x256xbf16>
    %cst_20 = arith.constant 0.000000e+00 : bf16
    %75 = vector.broadcast %cst_20 : bf16 to vector<8x64xbf16>
    %cst_21 = arith.constant 0.000000e+00 : f32
    %76 = vector.broadcast %cst_21 : f32 to vector<8x64xf32>
    %cst_22 = arith.constant dense<0.000000e+00> : vector<8x256xf32>
    %77 = tpu.matmul %75, %74, %cst_22 {dimension_numbers = #tpu.dot_dimension_numbers<[1], [0], [0], [1], [0, 0, 1, 1], [], []>} : vector<8x64xbf16>, vector<64x256xbf16>, vector<8x256xf32> -> vector<8x256xf32>
    %c0_23 = arith.constant 0 : index
    %c0_24 = arith.constant 0 : index
    %78 = vector.load %arg14[%c0_23, %c0_24] : memref<64x256xf32, #tpu.memory_space<vmem>>, vector<8x256xf32>
    %79 = arith.addf %78, %77 : vector<8x256xf32>
    %80 = math.tanh %79 : vector<8x256xf32>
    %cst_25 = arith.constant 5.000000e-01 : f32
    %81 = vector.broadcast %cst_25 : f32 to vector<8x256xf32>
    %82 = arith.mulf %81, %80 : vector<8x256xf32>
    %cst_26 = arith.constant 5.000000e-01 : f32
    %83 = vector.broadcast %cst_26 : f32 to vector<8x256xf32>
    %84 = arith.addf %82, %83 : vector<8x256xf32>
    %85 = vector.extract_strided_slice %84 {offsets = [0, 0], sizes = [8, 64], strides = [1, 1]} : vector<8x256xf32> to vector<8x64xf32>
    %86 = vector.extract_strided_slice %84 {offsets = [0, 64], sizes = [8, 64], strides = [1, 1]} : vector<8x256xf32> to vector<8x64xf32>
    %87 = vector.extract_strided_slice %80 {offsets = [0, 128], sizes = [8, 64], strides = [1, 1]} : vector<8x256xf32> to vector<8x64xf32>
    %88 = vector.extract_strided_slice %84 {offsets = [0, 192], sizes = [8, 64], strides = [1, 1]} : vector<8x256xf32> to vector<8x64xf32>
    %89 = arith.mulf %86, %76 : vector<8x64xf32>
    %90 = arith.mulf %85, %87 : vector<8x64xf32>
    %91 = arith.addf %89, %90 : vector<8x64xf32>
    %92 = math.tanh %91 : vector<8x64xf32>
    %93 = arith.mulf %88, %92 : vector<8x64xf32>
    %94 = arith.truncf %93 : vector<8x64xf32> to vector<8x64xbf16>
    %95 = vector.extract_strided_slice %93 {offsets = [0, 0], sizes = [8, 32], strides = [1, 1]} : vector<8x64xf32> to vector<8x32xf32>
    %c0_27 = arith.constant 0 : index
    %c0_28 = arith.constant 0 : index
    %96 = vector.load %arg15[%c0_27, %c0_28] : memref<64x128xf32, #tpu.memory_space<vmem>>, vector<8x32xf32>
    tpu.vector_store %arg15[%c0_27, %c0_28], %95 {strides = array<i32>} : memref<64x128xf32, #tpu.memory_space<vmem>>, vector<8x32xf32>,
    %97 = vector.extract_strided_slice %93 {offsets = [0, 32], sizes = [8, 32], strides = [1, 1]} : vector<8x64xf32> to vector<8x32xf32>
    %c56_29 = arith.constant 56 : index
    %c32_30 = arith.constant 32 : index
    %98 = vector.load %arg15[%c56_29, %c32_30] : memref<64x128xf32, #tpu.memory_space<vmem>>, vector<8x32xf32>
    tpu.vector_store %arg15[%c56_29, %c32_30], %97 {strides = array<i32>} : memref<64x128xf32, #tpu.memory_space<vmem>>, vector<8x32xf32>,
    %cst_31 = arith.constant dense<0.000000e+00> : vector<8x256xf32>
    %99 = tpu.matmul %94, %74, %cst_31 {dimension_numbers = #tpu.dot_dimension_numbers<[1], [0], [0], [1], [0, 0, 1, 1], [], []>} : vector<8x64xbf16>, vector<64x256xbf16>, vector<8x256xf32> -> vector<8x256xf32>
    %c8_32 = arith.constant 8 : index
    %c0_33 = arith.constant 0 : index
    %100 = vector.load %arg14[%c8_32, %c0_33] : memref<64x256xf32, #tpu.memory_space<vmem>>, vector<8x256xf32>
    %101 = arith.addf %100, %99 : vector<8x256xf32>
    %102 = math.tanh %101 : vector<8x256xf32>
    %cst_34 = arith.constant 5.000000e-01 : f32
    %103 = vector.broadcast %cst_34 : f32 to vector<8x256xf32>
    %104 = arith.mulf %103, %102 : vector<8x256xf32>
    %cst_35 = arith.constant 5.000000e-01 : f32
    %105 = vector.broadcast %cst_35 : f32 to vector<8x256xf32>
    %106 = arith.addf %104, %105 : vector<8x256xf32>
    %107 = vector.extract_strided_slice %106 {offsets = [0, 0], sizes = [8, 64], strides = [1, 1]} : vector<8x256xf32> to vector<8x64xf32>
    %108 = vector.extract_strided_slice %106 {offsets = [0, 64], sizes = [8, 64], strides = [1, 1]} : vector<8x256xf32> to vector<8x64xf32>
    %109 = vector.extract_strided_slice %102 {offsets = [0, 128], sizes = [8, 64], strides = [1, 1]} : vector<8x256xf32> to vector<8x64xf32>
    %110 = vector.extract_strided_slice %106 {offsets = [0, 192], sizes = [8, 64], strides = [1, 1]} : vector<8x256xf32> to vector<8x64xf32>
    %111 = arith.mulf %108, %91 : vector<8x64xf32>
    %112 = arith.mulf %107, %109 : vector<8x64xf32>
    %113 = arith.addf %111, %112 : vector<8x64xf32>
    %114 = math.tanh %113 : vector<8x64xf32>
    %115 = arith.mulf %110, %114 : vector<8x64xf32>
    %116 = arith.truncf %115 : vector<8x64xf32> to vector<8x64xbf16>
    %117 = vector.extract_strided_slice %115 {offsets = [0, 0], sizes = [8, 32], strides = [1, 1]} : vector<8x64xf32> to vector<8x32xf32>
    %c8_36 = arith.constant 8 : index
    %c0_37 = arith.constant 0 : index
    %118 = vector.load %arg15[%c8_36, %c0_37] : memref<64x128xf32, #tpu.memory_space<vmem>>, vector<8x32xf32>
    tpu.vector_store %arg15[%c8_36, %c0_37], %117 {strides = array<i32>} : memref<64x128xf32, #tpu.memory_space<vmem>>, vector<8x32xf32>,
    %119 = vector.extract_strided_slice %115 {offsets = [0, 32], sizes = [8, 32], strides = [1, 1]} : vector<8x64xf32> to vector<8x32xf32>
    %c48_38 = arith.constant 48 : index
    %c32_39 = arith.constant 32 : index
    %120 = vector.load %arg15[%c48_38, %c32_39] : memref<64x128xf32, #tpu.memory_space<vmem>>, vector<8x32xf32>
    tpu.vector_store %arg15[%c48_38, %c32_39], %119 {strides = array<i32>} : memref<64x128xf32, #tpu.memory_space<vmem>>, vector<8x32xf32>,
    %cst_40 = arith.constant dense<0.000000e+00> : vector<8x256xf32>
    %121 = tpu.matmul %116, %74, %cst_40 {dimension_numbers = #tpu.dot_dimension_numbers<[1], [0], [0], [1], [0, 0, 1, 1], [], []>} : vector<8x64xbf16>, vector<64x256xbf16>, vector<8x256xf32> -> vector<8x256xf32>
    %c16_41 = arith.constant 16 : index
    %c0_42 = arith.constant 0 : index
    %122 = vector.load %arg14[%c16_41, %c0_42] : memref<64x256xf32, #tpu.memory_space<vmem>>, vector<8x256xf32>
    %123 = arith.addf %122, %121 : vector<8x256xf32>
    %124 = math.tanh %123 : vector<8x256xf32>
    %cst_43 = arith.constant 5.000000e-01 : f32
    %125 = vector.broadcast %cst_43 : f32 to vector<8x256xf32>
    %126 = arith.mulf %125, %124 : vector<8x256xf32>
    %cst_44 = arith.constant 5.000000e-01 : f32
    %127 = vector.broadcast %cst_44 : f32 to vector<8x256xf32>
    %128 = arith.addf %126, %127 : vector<8x256xf32>
    %129 = vector.extract_strided_slice %128 {offsets = [0, 0], sizes = [8, 64], strides = [1, 1]} : vector<8x256xf32> to vector<8x64xf32>
    %130 = vector.extract_strided_slice %128 {offsets = [0, 64], sizes = [8, 64], strides = [1, 1]} : vector<8x256xf32> to vector<8x64xf32>
    %131 = vector.extract_strided_slice %124 {offsets = [0, 128], sizes = [8, 64], strides = [1, 1]} : vector<8x256xf32> to vector<8x64xf32>
    %132 = vector.extract_strided_slice %128 {offsets = [0, 192], sizes = [8, 64], strides = [1, 1]} : vector<8x256xf32> to vector<8x64xf32>
    %133 = arith.mulf %130, %113 : vector<8x64xf32>
    %134 = arith.mulf %129, %131 : vector<8x64xf32>
    %135 = arith.addf %133, %134 : vector<8x64xf32>
    %136 = math.tanh %135 : vector<8x64xf32>
    %137 = arith.mulf %132, %136 : vector<8x64xf32>
    %138 = arith.truncf %137 : vector<8x64xf32> to vector<8x64xbf16>
    %139 = vector.extract_strided_slice %137 {offsets = [0, 0], sizes = [8, 32], strides = [1, 1]} : vector<8x64xf32> to vector<8x32xf32>
    %c16_45 = arith.constant 16 : index
    %c0_46 = arith.constant 0 : index
    %140 = vector.load %arg15[%c16_45, %c0_46] : memref<64x128xf32, #tpu.memory_space<vmem>>, vector<8x32xf32>
    tpu.vector_store %arg15[%c16_45, %c0_46], %139 {strides = array<i32>} : memref<64x128xf32, #tpu.memory_space<vmem>>, vector<8x32xf32>,
    %141 = vector.extract_strided_slice %137 {offsets = [0, 32], sizes = [8, 32], strides = [1, 1]} : vector<8x64xf32> to vector<8x32xf32>
    %c40_47 = arith.constant 40 : index
    %c32_48 = arith.constant 32 : index
    %142 = vector.load %arg15[%c40_47, %c32_48] : memref<64x128xf32, #tpu.memory_space<vmem>>, vector<8x32xf32>
    tpu.vector_store %arg15[%c40_47, %c32_48], %141 {strides = array<i32>} : memref<64x128xf32, #tpu.memory_space<vmem>>, vector<8x32xf32>,
    %cst_49 = arith.constant dense<0.000000e+00> : vector<8x256xf32>
    %143 = tpu.matmul %138, %74, %cst_49 {dimension_numbers = #tpu.dot_dimension_numbers<[1], [0], [0], [1], [0, 0, 1, 1], [], []>} : vector<8x64xbf16>, vector<64x256xbf16>, vector<8x256xf32> -> vector<8x256xf32>
    %c24_50 = arith.constant 24 : index
    %c0_51 = arith.constant 0 : index
    %144 = vector.load %arg14[%c24_50, %c0_51] : memref<64x256xf32, #tpu.memory_space<vmem>>, vector<8x256xf32>
    %145 = arith.addf %144, %143 : vector<8x256xf32>
    %146 = math.tanh %145 : vector<8x256xf32>
    %cst_52 = arith.constant 5.000000e-01 : f32
    %147 = vector.broadcast %cst_52 : f32 to vector<8x256xf32>
    %148 = arith.mulf %147, %146 : vector<8x256xf32>
    %cst_53 = arith.constant 5.000000e-01 : f32
    %149 = vector.broadcast %cst_53 : f32 to vector<8x256xf32>
    %150 = arith.addf %148, %149 : vector<8x256xf32>
    %151 = vector.extract_strided_slice %150 {offsets = [0, 0], sizes = [8, 64], strides = [1, 1]} : vector<8x256xf32> to vector<8x64xf32>
    %152 = vector.extract_strided_slice %150 {offsets = [0, 64], sizes = [8, 64], strides = [1, 1]} : vector<8x256xf32> to vector<8x64xf32>
    %153 = vector.extract_strided_slice %146 {offsets = [0, 128], sizes = [8, 64], strides = [1, 1]} : vector<8x256xf32> to vector<8x64xf32>
    %154 = vector.extract_strided_slice %150 {offsets = [0, 192], sizes = [8, 64], strides = [1, 1]} : vector<8x256xf32> to vector<8x64xf32>
    %155 = arith.mulf %152, %135 : vector<8x64xf32>
    %156 = arith.mulf %151, %153 : vector<8x64xf32>
    %157 = arith.addf %155, %156 : vector<8x64xf32>
    %158 = math.tanh %157 : vector<8x64xf32>
    %159 = arith.mulf %154, %158 : vector<8x64xf32>
    %160 = arith.truncf %159 : vector<8x64xf32> to vector<8x64xbf16>
    %161 = vector.extract_strided_slice %159 {offsets = [0, 0], sizes = [8, 32], strides = [1, 1]} : vector<8x64xf32> to vector<8x32xf32>
    %c24_54 = arith.constant 24 : index
    %c0_55 = arith.constant 0 : index
    %162 = vector.load %arg15[%c24_54, %c0_55] : memref<64x128xf32, #tpu.memory_space<vmem>>, vector<8x32xf32>
    tpu.vector_store %arg15[%c24_54, %c0_55], %161 {strides = array<i32>} : memref<64x128xf32, #tpu.memory_space<vmem>>, vector<8x32xf32>,
    %163 = vector.extract_strided_slice %159 {offsets = [0, 32], sizes = [8, 32], strides = [1, 1]} : vector<8x64xf32> to vector<8x32xf32>
    %c32_56 = arith.constant 32 : index
    %c32_57 = arith.constant 32 : index
    %164 = vector.load %arg15[%c32_56, %c32_57] : memref<64x128xf32, #tpu.memory_space<vmem>>, vector<8x32xf32>
    tpu.vector_store %arg15[%c32_56, %c32_57], %163 {strides = array<i32>} : memref<64x128xf32, #tpu.memory_space<vmem>>, vector<8x32xf32>,
    %cst_58 = arith.constant dense<0.000000e+00> : vector<8x256xf32>
    %165 = tpu.matmul %160, %74, %cst_58 {dimension_numbers = #tpu.dot_dimension_numbers<[1], [0], [0], [1], [0, 0, 1, 1], [], []>} : vector<8x64xbf16>, vector<64x256xbf16>, vector<8x256xf32> -> vector<8x256xf32>
    %c32_59 = arith.constant 32 : index
    %c0_60 = arith.constant 0 : index
    %166 = vector.load %arg14[%c32_59, %c0_60] : memref<64x256xf32, #tpu.memory_space<vmem>>, vector<8x256xf32>
    %167 = arith.addf %166, %165 : vector<8x256xf32>
    %168 = math.tanh %167 : vector<8x256xf32>
    %cst_61 = arith.constant 5.000000e-01 : f32
    %169 = vector.broadcast %cst_61 : f32 to vector<8x256xf32>
    %170 = arith.mulf %169, %168 : vector<8x256xf32>
    %cst_62 = arith.constant 5.000000e-01 : f32
    %171 = vector.broadcast %cst_62 : f32 to vector<8x256xf32>
    %172 = arith.addf %170, %171 : vector<8x256xf32>
    %173 = vector.extract_strided_slice %172 {offsets = [0, 0], sizes = [8, 64], strides = [1, 1]} : vector<8x256xf32> to vector<8x64xf32>
    %174 = vector.extract_strided_slice %172 {offsets = [0, 64], sizes = [8, 64], strides = [1, 1]} : vector<8x256xf32> to vector<8x64xf32>
    %175 = vector.extract_strided_slice %168 {offsets = [0, 128], sizes = [8, 64], strides = [1, 1]} : vector<8x256xf32> to vector<8x64xf32>
    %176 = vector.extract_strided_slice %172 {offsets = [0, 192], sizes = [8, 64], strides = [1, 1]} : vector<8x256xf32> to vector<8x64xf32>
    %177 = arith.mulf %174, %157 : vector<8x64xf32>
    %178 = arith.mulf %173, %175 : vector<8x64xf32>
    %179 = arith.addf %177, %178 : vector<8x64xf32>
    %180 = math.tanh %179 : vector<8x64xf32>
    %181 = arith.mulf %176, %180 : vector<8x64xf32>
    %182 = arith.truncf %181 : vector<8x64xf32> to vector<8x64xbf16>
    %183 = vector.extract_strided_slice %181 {offsets = [0, 0], sizes = [8, 32], strides = [1, 1]} : vector<8x64xf32> to vector<8x32xf32>
    %c32_63 = arith.constant 32 : index
    %c0_64 = arith.constant 0 : index
    %184 = vector.load %arg15[%c32_63, %c0_64] : memref<64x128xf32, #tpu.memory_space<vmem>>, vector<8x32xf32>
    tpu.vector_store %arg15[%c32_63, %c0_64], %183 {strides = array<i32>} : memref<64x128xf32, #tpu.memory_space<vmem>>, vector<8x32xf32>,
    %185 = vector.extract_strided_slice %181 {offsets = [0, 32], sizes = [8, 32], strides = [1, 1]} : vector<8x64xf32> to vector<8x32xf32>
    %c24_65 = arith.constant 24 : index
    %c32_66 = arith.constant 32 : index
    %186 = vector.load %arg15[%c24_65, %c32_66] : memref<64x128xf32, #tpu.memory_space<vmem>>, vector<8x32xf32>
    tpu.vector_store %arg15[%c24_65, %c32_66], %185 {strides = array<i32>} : memref<64x128xf32, #tpu.memory_space<vmem>>, vector<8x32xf32>,
    %cst_67 = arith.constant dense<0.000000e+00> : vector<8x256xf32>
    %187 = tpu.matmul %182, %74, %cst_67 {dimension_numbers = #tpu.dot_dimension_numbers<[1], [0], [0], [1], [0, 0, 1, 1], [], []>} : vector<8x64xbf16>, vector<64x256xbf16>, vector<8x256xf32> -> vector<8x256xf32>
    %c40_68 = arith.constant 40 : index
    %c0_69 = arith.constant 0 : index
    %188 = vector.load %arg14[%c40_68, %c0_69] : memref<64x256xf32, #tpu.memory_space<vmem>>, vector<8x256xf32>
    %189 = arith.addf %188, %187 : vector<8x256xf32>
    %190 = math.tanh %189 : vector<8x256xf32>
    %cst_70 = arith.constant 5.000000e-01 : f32
    %191 = vector.broadcast %cst_70 : f32 to vector<8x256xf32>
    %192 = arith.mulf %191, %190 : vector<8x256xf32>
    %cst_71 = arith.constant 5.000000e-01 : f32
    %193 = vector.broadcast %cst_71 : f32 to vector<8x256xf32>
    %194 = arith.addf %192, %193 : vector<8x256xf32>
    %195 = vector.extract_strided_slice %194 {offsets = [0, 0], sizes = [8, 64], strides = [1, 1]} : vector<8x256xf32> to vector<8x64xf32>
    %196 = vector.extract_strided_slice %194 {offsets = [0, 64], sizes = [8, 64], strides = [1, 1]} : vector<8x256xf32> to vector<8x64xf32>
    %197 = vector.extract_strided_slice %190 {offsets = [0, 128], sizes = [8, 64], strides = [1, 1]} : vector<8x256xf32> to vector<8x64xf32>
    %198 = vector.extract_strided_slice %194 {offsets = [0, 192], sizes = [8, 64], strides = [1, 1]} : vector<8x256xf32> to vector<8x64xf32>
    %199 = arith.mulf %196, %179 : vector<8x64xf32>
    %200 = arith.mulf %195, %197 : vector<8x64xf32>
    %201 = arith.addf %199, %200 : vector<8x64xf32>
    %202 = math.tanh %201 : vector<8x64xf32>
    %203 = arith.mulf %198, %202 : vector<8x64xf32>
    %204 = arith.truncf %203 : vector<8x64xf32> to vector<8x64xbf16>
    %205 = vector.extract_strided_slice %203 {offsets = [0, 0], sizes = [8, 32], strides = [1, 1]} : vector<8x64xf32> to vector<8x32xf32>
    %c40_72 = arith.constant 40 : index
    %c0_73 = arith.constant 0 : index
    %206 = vector.load %arg15[%c40_72, %c0_73] : memref<64x128xf32, #tpu.memory_space<vmem>>, vector<8x32xf32>
    tpu.vector_store %arg15[%c40_72, %c0_73], %205 {strides = array<i32>} : memref<64x128xf32, #tpu.memory_space<vmem>>, vector<8x32xf32>,
    %207 = vector.extract_strided_slice %203 {offsets = [0, 32], sizes = [8, 32], strides = [1, 1]} : vector<8x64xf32> to vector<8x32xf32>
    %c16_74 = arith.constant 16 : index
    %c32_75 = arith.constant 32 : index
    %208 = vector.load %arg15[%c16_74, %c32_75] : memref<64x128xf32, #tpu.memory_space<vmem>>, vector<8x32xf32>
    tpu.vector_store %arg15[%c16_74, %c32_75], %207 {strides = array<i32>} : memref<64x128xf32, #tpu.memory_space<vmem>>, vector<8x32xf32>,
    %cst_76 = arith.constant dense<0.000000e+00> : vector<8x256xf32>
    %209 = tpu.matmul %204, %74, %cst_76 {dimension_numbers = #tpu.dot_dimension_numbers<[1], [0], [0], [1], [0, 0, 1, 1], [], []>} : vector<8x64xbf16>, vector<64x256xbf16>, vector<8x256xf32> -> vector<8x256xf32>
    %c48_77 = arith.constant 48 : index
    %c0_78 = arith.constant 0 : index
    %210 = vector.load %arg14[%c48_77, %c0_78] : memref<64x256xf32, #tpu.memory_space<vmem>>, vector<8x256xf32>
    %211 = arith.addf %210, %209 : vector<8x256xf32>
    %212 = math.tanh %211 : vector<8x256xf32>
    %cst_79 = arith.constant 5.000000e-01 : f32
    %213 = vector.broadcast %cst_79 : f32 to vector<8x256xf32>
    %214 = arith.mulf %213, %212 : vector<8x256xf32>
    %cst_80 = arith.constant 5.000000e-01 : f32
    %215 = vector.broadcast %cst_80 : f32 to vector<8x256xf32>
    %216 = arith.addf %214, %215 : vector<8x256xf32>
    %217 = vector.extract_strided_slice %216 {offsets = [0, 0], sizes = [8, 64], strides = [1, 1]} : vector<8x256xf32> to vector<8x64xf32>
    %218 = vector.extract_strided_slice %216 {offsets = [0, 64], sizes = [8, 64], strides = [1, 1]} : vector<8x256xf32> to vector<8x64xf32>
    %219 = vector.extract_strided_slice %212 {offsets = [0, 128], sizes = [8, 64], strides = [1, 1]} : vector<8x256xf32> to vector<8x64xf32>
    %220 = vector.extract_strided_slice %216 {offsets = [0, 192], sizes = [8, 64], strides = [1, 1]} : vector<8x256xf32> to vector<8x64xf32>
    %221 = arith.mulf %218, %201 : vector<8x64xf32>
    %222 = arith.mulf %217, %219 : vector<8x64xf32>
    %223 = arith.addf %221, %222 : vector<8x64xf32>
    %224 = math.tanh %223 : vector<8x64xf32>
    %225 = arith.mulf %220, %224 : vector<8x64xf32>
    %226 = arith.truncf %225 : vector<8x64xf32> to vector<8x64xbf16>
    %227 = vector.extract_strided_slice %225 {offsets = [0, 0], sizes = [8, 32], strides = [1, 1]} : vector<8x64xf32> to vector<8x32xf32>
    %c48_81 = arith.constant 48 : index
    %c0_82 = arith.constant 0 : index
    %228 = vector.load %arg15[%c48_81, %c0_82] : memref<64x128xf32, #tpu.memory_space<vmem>>, vector<8x32xf32>
    tpu.vector_store %arg15[%c48_81, %c0_82], %227 {strides = array<i32>} : memref<64x128xf32, #tpu.memory_space<vmem>>, vector<8x32xf32>,
    %229 = vector.extract_strided_slice %225 {offsets = [0, 32], sizes = [8, 32], strides = [1, 1]} : vector<8x64xf32> to vector<8x32xf32>
    %c8_83 = arith.constant 8 : index
    %c32_84 = arith.constant 32 : index
    %230 = vector.load %arg15[%c8_83, %c32_84] : memref<64x128xf32, #tpu.memory_space<vmem>>, vector<8x32xf32>
    tpu.vector_store %arg15[%c8_83, %c32_84], %229 {strides = array<i32>} : memref<64x128xf32, #tpu.memory_space<vmem>>, vector<8x32xf32>,
    %cst_85 = arith.constant dense<0.000000e+00> : vector<8x256xf32>
    %231 = tpu.matmul %226, %74, %cst_85 {dimension_numbers = #tpu.dot_dimension_numbers<[1], [0], [0], [1], [0, 0, 1, 1], [], []>} : vector<8x64xbf16>, vector<64x256xbf16>, vector<8x256xf32> -> vector<8x256xf32>
    %c56_86 = arith.constant 56 : index
    %c0_87 = arith.constant 0 : index
    %232 = vector.load %arg14[%c56_86, %c0_87] : memref<64x256xf32, #tpu.memory_space<vmem>>, vector<8x256xf32>
    %233 = arith.addf %232, %231 : vector<8x256xf32>
    %234 = math.tanh %233 : vector<8x256xf32>
    %cst_88 = arith.constant 5.000000e-01 : f32
    %235 = vector.broadcast %cst_88 : f32 to vector<8x256xf32>
    %236 = arith.mulf %235, %234 : vector<8x256xf32>
    %cst_89 = arith.constant 5.000000e-01 : f32
    %237 = vector.broadcast %cst_89 : f32 to vector<8x256xf32>
    %238 = arith.addf %236, %237 : vector<8x256xf32>
    %239 = vector.extract_strided_slice %238 {offsets = [0, 0], sizes = [8, 64], strides = [1, 1]} : vector<8x256xf32> to vector<8x64xf32>
    %240 = vector.extract_strided_slice %238 {offsets = [0, 64], sizes = [8, 64], strides = [1, 1]} : vector<8x256xf32> to vector<8x64xf32>
    %241 = vector.extract_strided_slice %234 {offsets = [0, 128], sizes = [8, 64], strides = [1, 1]} : vector<8x256xf32> to vector<8x64xf32>
    %242 = vector.extract_strided_slice %238 {offsets = [0, 192], sizes = [8, 64], strides = [1, 1]} : vector<8x256xf32> to vector<8x64xf32>
    %243 = arith.mulf %240, %223 : vector<8x64xf32>
    %244 = arith.mulf %239, %241 : vector<8x64xf32>
    %245 = arith.addf %243, %244 : vector<8x64xf32>
    %246 = math.tanh %245 : vector<8x64xf32>
    %247 = arith.mulf %242, %246 : vector<8x64xf32>
    %248 = vector.extract_strided_slice %247 {offsets = [0, 0], sizes = [8, 32], strides = [1, 1]} : vector<8x64xf32> to vector<8x32xf32>
    %c56_90 = arith.constant 56 : index
    %c0_91 = arith.constant 0 : index
    %249 = vector.load %arg15[%c56_90, %c0_91] : memref<64x128xf32, #tpu.memory_space<vmem>>, vector<8x32xf32>
    tpu.vector_store %arg15[%c56_90, %c0_91], %248 {strides = array<i32>} : memref<64x128xf32, #tpu.memory_space<vmem>>, vector<8x32xf32>,
    %250 = vector.extract_strided_slice %247 {offsets = [0, 32], sizes = [8, 32], strides = [1, 1]} : vector<8x64xf32> to vector<8x32xf32>
    %c0_92 = arith.constant 0 : index
    %c32_93 = arith.constant 32 : index
    %251 = vector.load %arg15[%c0_92, %c32_93] : memref<64x128xf32, #tpu.memory_space<vmem>>, vector<8x32xf32>
    tpu.vector_store %arg15[%c0_92, %c32_93], %250 {strides = array<i32>} : memref<64x128xf32, #tpu.memory_space<vmem>>, vector<8x32xf32>,
    %c0_94 = arith.constant 0 : index
    %c0_95 = arith.constant 0 : index
    %252 = vector.load %arg15[%c0_94, %c0_95] : memref<64x128xf32, #tpu.memory_space<vmem>>, vector<64x64xf32>
    %253 = arith.truncf %252 : vector<64x64xf32> to vector<64x64xbf16>
    %c0_96 = arith.constant 0 : index
    %c0_97 = arith.constant 0 : index
    %254 = vector.load %arg5[%c0_96, %c0_97] : memref<64x256xbf16, #tpu.memory_space<vmem>>, vector<64x256xbf16>
    %cst_98 = arith.constant dense<0.000000e+00> : vector<64x256xf32>
    %255 = tpu.matmul %253, %254, %cst_98 {dimension_numbers = #tpu.dot_dimension_numbers<[1], [0], [0], [1], [0, 0, 1, 1], [], []>} : vector<64x64xbf16>, vector<64x256xbf16>, vector<64x256xf32> -> vector<64x256xf32>
    %c0_99 = arith.constant 0 : index
    %c0_100 = arith.constant 0 : index
    %256 = vector.load %arg7[%c0_99, %c0_100] : memref<1x256xf32, #tpu.memory_space<vmem>>, vector<1x256xf32>
    %257 = vector.broadcast %256 : vector<1x256xf32> to vector<64x256xf32>
    %258 = arith.addf %255, %257 : vector<64x256xf32>
    %259 = vector.extract_strided_slice %258 {offsets = [0, 0], sizes = [8, 256], strides = [1, 1]} : vector<64x256xf32> to vector<8x256xf32>
    %260 = vector.broadcast %0 : vector<1x256xf32> to vector<8x256xf32>
    %261 = arith.mulf %259, %260 : vector<8x256xf32>
    %262 = vector.extract_strided_slice %258 {offsets = [56, 0], sizes = [8, 256], strides = [1, 1]} : vector<64x256xf32> to vector<8x256xf32>
    %263 = vector.broadcast %1 : vector<1x256xf32> to vector<8x256xf32>
    %264 = arith.mulf %262, %263 : vector<8x256xf32>
    %265 = arith.addf %261, %264 : vector<8x256xf32>
    %c0_101 = arith.constant 0 : index
    %c0_102 = arith.constant 0 : index
    %266 = vector.load %arg14[%c0_101, %c0_102] : memref<64x256xf32, #tpu.memory_space<vmem>>, vector<8x256xf32>
    tpu.vector_store %arg14[%c0_101, %c0_102], %265 {strides = array<i32>} : memref<64x256xf32, #tpu.memory_space<vmem>>, vector<8x256xf32>,
    %267 = vector.extract_strided_slice %258 {offsets = [8, 0], sizes = [8, 256], strides = [1, 1]} : vector<64x256xf32> to vector<8x256xf32>
    %268 = vector.broadcast %0 : vector<1x256xf32> to vector<8x256xf32>
    %269 = arith.mulf %267, %268 : vector<8x256xf32>
    %270 = vector.extract_strided_slice %258 {offsets = [48, 0], sizes = [8, 256], strides = [1, 1]} : vector<64x256xf32> to vector<8x256xf32>
    %271 = vector.broadcast %1 : vector<1x256xf32> to vector<8x256xf32>
    %272 = arith.mulf %270, %271 : vector<8x256xf32>
    %273 = arith.addf %269, %272 : vector<8x256xf32>
    %c8_103 = arith.constant 8 : index
    %c0_104 = arith.constant 0 : index
    %274 = vector.load %arg14[%c8_103, %c0_104] : memref<64x256xf32, #tpu.memory_space<vmem>>, vector<8x256xf32>
    tpu.vector_store %arg14[%c8_103, %c0_104], %273 {strides = array<i32>} : memref<64x256xf32, #tpu.memory_space<vmem>>, vector<8x256xf32>,
    %275 = vector.extract_strided_slice %258 {offsets = [16, 0], sizes = [8, 256], strides = [1, 1]} : vector<64x256xf32> to vector<8x256xf32>
    %276 = vector.broadcast %0 : vector<1x256xf32> to vector<8x256xf32>
    %277 = arith.mulf %275, %276 : vector<8x256xf32>
    %278 = vector.extract_strided_slice %258 {offsets = [40, 0], sizes = [8, 256], strides = [1, 1]} : vector<64x256xf32> to vector<8x256xf32>
    %279 = vector.broadcast %1 : vector<1x256xf32> to vector<8x256xf32>
    %280 = arith.mulf %278, %279 : vector<8x256xf32>
    %281 = arith.addf %277, %280 : vector<8x256xf32>
    %c16_105 = arith.constant 16 : index
    %c0_106 = arith.constant 0 : index
    %282 = vector.load %arg14[%c16_105, %c0_106] : memref<64x256xf32, #tpu.memory_space<vmem>>, vector<8x256xf32>
    tpu.vector_store %arg14[%c16_105, %c0_106], %281 {strides = array<i32>} : memref<64x256xf32, #tpu.memory_space<vmem>>, vector<8x256xf32>,
    %283 = vector.extract_strided_slice %258 {offsets = [24, 0], sizes = [8, 256], strides = [1, 1]} : vector<64x256xf32> to vector<8x256xf32>
    %284 = vector.broadcast %0 : vector<1x256xf32> to vector<8x256xf32>
    %285 = arith.mulf %283, %284 : vector<8x256xf32>
    %286 = vector.extract_strided_slice %258 {offsets = [32, 0], sizes = [8, 256], strides = [1, 1]} : vector<64x256xf32> to vector<8x256xf32>
    %287 = vector.broadcast %1 : vector<1x256xf32> to vector<8x256xf32>
    %288 = arith.mulf %286, %287 : vector<8x256xf32>
    %289 = arith.addf %285, %288 : vector<8x256xf32>
    %c24_107 = arith.constant 24 : index
    %c0_108 = arith.constant 0 : index
    %290 = vector.load %arg14[%c24_107, %c0_108] : memref<64x256xf32, #tpu.memory_space<vmem>>, vector<8x256xf32>
    tpu.vector_store %arg14[%c24_107, %c0_108], %289 {strides = array<i32>} : memref<64x256xf32, #tpu.memory_space<vmem>>, vector<8x256xf32>,
    %291 = vector.extract_strided_slice %258 {offsets = [32, 0], sizes = [8, 256], strides = [1, 1]} : vector<64x256xf32> to vector<8x256xf32>
    %292 = vector.broadcast %0 : vector<1x256xf32> to vector<8x256xf32>
    %293 = arith.mulf %291, %292 : vector<8x256xf32>
    %294 = vector.extract_strided_slice %258 {offsets = [24, 0], sizes = [8, 256], strides = [1, 1]} : vector<64x256xf32> to vector<8x256xf32>
    %295 = vector.broadcast %1 : vector<1x256xf32> to vector<8x256xf32>
    %296 = arith.mulf %294, %295 : vector<8x256xf32>
    %297 = arith.addf %293, %296 : vector<8x256xf32>
    %c32_109 = arith.constant 32 : index
    %c0_110 = arith.constant 0 : index
    %298 = vector.load %arg14[%c32_109, %c0_110] : memref<64x256xf32, #tpu.memory_space<vmem>>, vector<8x256xf32>
    tpu.vector_store %arg14[%c32_109, %c0_110], %297 {strides = array<i32>} : memref<64x256xf32, #tpu.memory_space<vmem>>, vector<8x256xf32>,
    %299 = vector.extract_strided_slice %258 {offsets = [40, 0], sizes = [8, 256], strides = [1, 1]} : vector<64x256xf32> to vector<8x256xf32>
    %300 = vector.broadcast %0 : vector<1x256xf32> to vector<8x256xf32>
    %301 = arith.mulf %299, %300 : vector<8x256xf32>
    %302 = vector.extract_strided_slice %258 {offsets = [16, 0], sizes = [8, 256], strides = [1, 1]} : vector<64x256xf32> to vector<8x256xf32>
    %303 = vector.broadcast %1 : vector<1x256xf32> to vector<8x256xf32>
    %304 = arith.mulf %302, %303 : vector<8x256xf32>
    %305 = arith.addf %301, %304 : vector<8x256xf32>
    %c40_111 = arith.constant 40 : index
    %c0_112 = arith.constant 0 : index
    %306 = vector.load %arg14[%c40_111, %c0_112] : memref<64x256xf32, #tpu.memory_space<vmem>>, vector<8x256xf32>
    tpu.vector_store %arg14[%c40_111, %c0_112], %305 {strides = array<i32>} : memref<64x256xf32, #tpu.memory_space<vmem>>, vector<8x256xf32>,
    %307 = vector.extract_strided_slice %258 {offsets = [48, 0], sizes = [8, 256], strides = [1, 1]} : vector<64x256xf32> to vector<8x256xf32>
    %308 = vector.broadcast %0 : vector<1x256xf32> to vector<8x256xf32>
    %309 = arith.mulf %307, %308 : vector<8x256xf32>
    %310 = vector.extract_strided_slice %258 {offsets = [8, 0], sizes = [8, 256], strides = [1, 1]} : vector<64x256xf32> to vector<8x256xf32>
    %311 = vector.broadcast %1 : vector<1x256xf32> to vector<8x256xf32>
    %312 = arith.mulf %310, %311 : vector<8x256xf32>
    %313 = arith.addf %309, %312 : vector<8x256xf32>
    %c48_113 = arith.constant 48 : index
    %c0_114 = arith.constant 0 : index
    %314 = vector.load %arg14[%c48_113, %c0_114] : memref<64x256xf32, #tpu.memory_space<vmem>>, vector<8x256xf32>
    tpu.vector_store %arg14[%c48_113, %c0_114], %313 {strides = array<i32>} : memref<64x256xf32, #tpu.memory_space<vmem>>, vector<8x256xf32>,
    %315 = vector.extract_strided_slice %258 {offsets = [56, 0], sizes = [8, 256], strides = [1, 1]} : vector<64x256xf32> to vector<8x256xf32>
    %316 = vector.broadcast %0 : vector<1x256xf32> to vector<8x256xf32>
    %317 = arith.mulf %315, %316 : vector<8x256xf32>
    %318 = vector.extract_strided_slice %258 {offsets = [0, 0], sizes = [8, 256], strides = [1, 1]} : vector<64x256xf32> to vector<8x256xf32>
    %319 = vector.broadcast %1 : vector<1x256xf32> to vector<8x256xf32>
    %320 = arith.mulf %318, %319 : vector<8x256xf32>
    %321 = arith.addf %317, %320 : vector<8x256xf32>
    %c56_115 = arith.constant 56 : index
    %c0_116 = arith.constant 0 : index
    %322 = vector.load %arg14[%c56_115, %c0_116] : memref<64x256xf32, #tpu.memory_space<vmem>>, vector<8x256xf32>
    tpu.vector_store %arg14[%c56_115, %c0_116], %321 {strides = array<i32>} : memref<64x256xf32, #tpu.memory_space<vmem>>, vector<8x256xf32>,
    %c0_117 = arith.constant 0 : index
    %c0_118 = arith.constant 0 : index
    %323 = vector.load %arg6[%c0_117, %c0_118] : memref<64x256xbf16, #tpu.memory_space<vmem>>, vector<64x256xbf16>
    %cst_119 = arith.constant 0.000000e+00 : bf16
    %324 = vector.broadcast %cst_119 : bf16 to vector<8x64xbf16>
    %cst_120 = arith.constant 0.000000e+00 : f32
    %325 = vector.broadcast %cst_120 : f32 to vector<8x64xf32>
    %cst_121 = arith.constant dense<0.000000e+00> : vector<8x256xf32>
    %326 = tpu.matmul %324, %323, %cst_121 {dimension_numbers = #tpu.dot_dimension_numbers<[1], [0], [0], [1], [0, 0, 1, 1], [], []>} : vector<8x64xbf16>, vector<64x256xbf16>, vector<8x256xf32> -> vector<8x256xf32>
    %c0_122 = arith.constant 0 : index
    %c0_123 = arith.constant 0 : index
    %327 = vector.load %arg14[%c0_122, %c0_123] : memref<64x256xf32, #tpu.memory_space<vmem>>, vector<8x256xf32>
    %328 = arith.addf %327, %326 : vector<8x256xf32>
    %329 = math.tanh %328 : vector<8x256xf32>
    %cst_124 = arith.constant 5.000000e-01 : f32
    %330 = vector.broadcast %cst_124 : f32 to vector<8x256xf32>
    %331 = arith.mulf %330, %329 : vector<8x256xf32>
    %cst_125 = arith.constant 5.000000e-01 : f32
    %332 = vector.broadcast %cst_125 : f32 to vector<8x256xf32>
    %333 = arith.addf %331, %332 : vector<8x256xf32>
    %334 = vector.extract_strided_slice %333 {offsets = [0, 0], sizes = [8, 64], strides = [1, 1]} : vector<8x256xf32> to vector<8x64xf32>
    %335 = vector.extract_strided_slice %333 {offsets = [0, 64], sizes = [8, 64], strides = [1, 1]} : vector<8x256xf32> to vector<8x64xf32>
    %336 = vector.extract_strided_slice %329 {offsets = [0, 128], sizes = [8, 64], strides = [1, 1]} : vector<8x256xf32> to vector<8x64xf32>
    %337 = vector.extract_strided_slice %333 {offsets = [0, 192], sizes = [8, 64], strides = [1, 1]} : vector<8x256xf32> to vector<8x64xf32>
    %338 = arith.mulf %335, %325 : vector<8x64xf32>
    %339 = arith.mulf %334, %336 : vector<8x64xf32>
    %340 = arith.addf %338, %339 : vector<8x64xf32>
    %341 = math.tanh %340 : vector<8x64xf32>
    %342 = arith.mulf %337, %341 : vector<8x64xf32>
    %343 = arith.truncf %342 : vector<8x64xf32> to vector<8x64xbf16>
    %344 = vector.extract_strided_slice %342 {offsets = [0, 0], sizes = [8, 32], strides = [1, 1]} : vector<8x64xf32> to vector<8x32xf32>
    %c0_126 = arith.constant 0 : index
    %c64 = arith.constant 64 : index
    %345 = vector.load %arg15[%c0_126, %c64] : memref<64x128xf32, #tpu.memory_space<vmem>>, vector<8x32xf32>
    tpu.vector_store %arg15[%c0_126, %c64], %344 {strides = array<i32>} : memref<64x128xf32, #tpu.memory_space<vmem>>, vector<8x32xf32>,
    %346 = vector.extract_strided_slice %342 {offsets = [0, 32], sizes = [8, 32], strides = [1, 1]} : vector<8x64xf32> to vector<8x32xf32>
    %c56_127 = arith.constant 56 : index
    %c96 = arith.constant 96 : index
    %347 = vector.load %arg15[%c56_127, %c96] : memref<64x128xf32, #tpu.memory_space<vmem>>, vector<8x32xf32>
    tpu.vector_store %arg15[%c56_127, %c96], %346 {strides = array<i32>} : memref<64x128xf32, #tpu.memory_space<vmem>>, vector<8x32xf32>,
    %cst_128 = arith.constant dense<0.000000e+00> : vector<8x256xf32>
    %348 = tpu.matmul %343, %323, %cst_128 {dimension_numbers = #tpu.dot_dimension_numbers<[1], [0], [0], [1], [0, 0, 1, 1], [], []>} : vector<8x64xbf16>, vector<64x256xbf16>, vector<8x256xf32> -> vector<8x256xf32>
    %c8_129 = arith.constant 8 : index
    %c0_130 = arith.constant 0 : index
    %349 = vector.load %arg14[%c8_129, %c0_130] : memref<64x256xf32, #tpu.memory_space<vmem>>, vector<8x256xf32>
    %350 = arith.addf %349, %348 : vector<8x256xf32>
    %351 = math.tanh %350 : vector<8x256xf32>
    %cst_131 = arith.constant 5.000000e-01 : f32
    %352 = vector.broadcast %cst_131 : f32 to vector<8x256xf32>
    %353 = arith.mulf %352, %351 : vector<8x256xf32>
    %cst_132 = arith.constant 5.000000e-01 : f32
    %354 = vector.broadcast %cst_132 : f32 to vector<8x256xf32>
    %355 = arith.addf %353, %354 : vector<8x256xf32>
    %356 = vector.extract_strided_slice %355 {offsets = [0, 0], sizes = [8, 64], strides = [1, 1]} : vector<8x256xf32> to vector<8x64xf32>
    %357 = vector.extract_strided_slice %355 {offsets = [0, 64], sizes = [8, 64], strides = [1, 1]} : vector<8x256xf32> to vector<8x64xf32>
    %358 = vector.extract_strided_slice %351 {offsets = [0, 128], sizes = [8, 64], strides = [1, 1]} : vector<8x256xf32> to vector<8x64xf32>
    %359 = vector.extract_strided_slice %355 {offsets = [0, 192], sizes = [8, 64], strides = [1, 1]} : vector<8x256xf32> to vector<8x64xf32>
    %360 = arith.mulf %357, %340 : vector<8x64xf32>
    %361 = arith.mulf %356, %358 : vector<8x64xf32>
    %362 = arith.addf %360, %361 : vector<8x64xf32>
    %363 = math.tanh %362 : vector<8x64xf32>
    %364 = arith.mulf %359, %363 : vector<8x64xf32>
    %365 = arith.truncf %364 : vector<8x64xf32> to vector<8x64xbf16>
    %366 = vector.extract_strided_slice %364 {offsets = [0, 0], sizes = [8, 32], strides = [1, 1]} : vector<8x64xf32> to vector<8x32xf32>
    %c8_133 = arith.constant 8 : index
    %c64_134 = arith.constant 64 : index
    %367 = vector.load %arg15[%c8_133, %c64_134] : memref<64x128xf32, #tpu.memory_space<vmem>>, vector<8x32xf32>
    tpu.vector_store %arg15[%c8_133, %c64_134], %366 {strides = array<i32>} : memref<64x128xf32, #tpu.memory_space<vmem>>, vector<8x32xf32>,
    %368 = vector.extract_strided_slice %364 {offsets = [0, 32], sizes = [8, 32], strides = [1, 1]} : vector<8x64xf32> to vector<8x32xf32>
    %c48_135 = arith.constant 48 : index
    %c96_136 = arith.constant 96 : index
    %369 = vector.load %arg15[%c48_135, %c96_136] : memref<64x128xf32, #tpu.memory_space<vmem>>, vector<8x32xf32>
    tpu.vector_store %arg15[%c48_135, %c96_136], %368 {strides = array<i32>} : memref<64x128xf32, #tpu.memory_space<vmem>>, vector<8x32xf32>,
    %cst_137 = arith.constant dense<0.000000e+00> : vector<8x256xf32>
    %370 = tpu.matmul %365, %323, %cst_137 {dimension_numbers = #tpu.dot_dimension_numbers<[1], [0], [0], [1], [0, 0, 1, 1], [], []>} : vector<8x64xbf16>, vector<64x256xbf16>, vector<8x256xf32> -> vector<8x256xf32>
    %c16_138 = arith.constant 16 : index
    %c0_139 = arith.constant 0 : index
    %371 = vector.load %arg14[%c16_138, %c0_139] : memref<64x256xf32, #tpu.memory_space<vmem>>, vector<8x256xf32>
    %372 = arith.addf %371, %370 : vector<8x256xf32>
    %373 = math.tanh %372 : vector<8x256xf32>
    %cst_140 = arith.constant 5.000000e-01 : f32
    %374 = vector.broadcast %cst_140 : f32 to vector<8x256xf32>
    %375 = arith.mulf %374, %373 : vector<8x256xf32>
    %cst_141 = arith.constant 5.000000e-01 : f32
    %376 = vector.broadcast %cst_141 : f32 to vector<8x256xf32>
    %377 = arith.addf %375, %376 : vector<8x256xf32>
    %378 = vector.extract_strided_slice %377 {offsets = [0, 0], sizes = [8, 64], strides = [1, 1]} : vector<8x256xf32> to vector<8x64xf32>
    %379 = vector.extract_strided_slice %377 {offsets = [0, 64], sizes = [8, 64], strides = [1, 1]} : vector<8x256xf32> to vector<8x64xf32>
    %380 = vector.extract_strided_slice %373 {offsets = [0, 128], sizes = [8, 64], strides = [1, 1]} : vector<8x256xf32> to vector<8x64xf32>
    %381 = vector.extract_strided_slice %377 {offsets = [0, 192], sizes = [8, 64], strides = [1, 1]} : vector<8x256xf32> to vector<8x64xf32>
    %382 = arith.mulf %379, %362 : vector<8x64xf32>
    %383 = arith.mulf %378, %380 : vector<8x64xf32>
    %384 = arith.addf %382, %383 : vector<8x64xf32>
    %385 = math.tanh %384 : vector<8x64xf32>
    %386 = arith.mulf %381, %385 : vector<8x64xf32>
    %387 = arith.truncf %386 : vector<8x64xf32> to vector<8x64xbf16>
    %388 = vector.extract_strided_slice %386 {offsets = [0, 0], sizes = [8, 32], strides = [1, 1]} : vector<8x64xf32> to vector<8x32xf32>
    %c16_142 = arith.constant 16 : index
    %c64_143 = arith.constant 64 : index
    %389 = vector.load %arg15[%c16_142, %c64_143] : memref<64x128xf32, #tpu.memory_space<vmem>>, vector<8x32xf32>
    tpu.vector_store %arg15[%c16_142, %c64_143], %388 {strides = array<i32>} : memref<64x128xf32, #tpu.memory_space<vmem>>, vector<8x32xf32>,
    %390 = vector.extract_strided_slice %386 {offsets = [0, 32], sizes = [8, 32], strides = [1, 1]} : vector<8x64xf32> to vector<8x32xf32>
    %c40_144 = arith.constant 40 : index
    %c96_145 = arith.constant 96 : index
    %391 = vector.load %arg15[%c40_144, %c96_145] : memref<64x128xf32, #tpu.memory_space<vmem>>, vector<8x32xf32>
    tpu.vector_store %arg15[%c40_144, %c96_145], %390 {strides = array<i32>} : memref<64x128xf32, #tpu.memory_space<vmem>>, vector<8x32xf32>,
    %cst_146 = arith.constant dense<0.000000e+00> : vector<8x256xf32>
    %392 = tpu.matmul %387, %323, %cst_146 {dimension_numbers = #tpu.dot_dimension_numbers<[1], [0], [0], [1], [0, 0, 1, 1], [], []>} : vector<8x64xbf16>, vector<64x256xbf16>, vector<8x256xf32> -> vector<8x256xf32>
    %c24_147 = arith.constant 24 : index
    %c0_148 = arith.constant 0 : index
    %393 = vector.load %arg14[%c24_147, %c0_148] : memref<64x256xf32, #tpu.memory_space<vmem>>, vector<8x256xf32>
    %394 = arith.addf %393, %392 : vector<8x256xf32>
    %395 = math.tanh %394 : vector<8x256xf32>
    %cst_149 = arith.constant 5.000000e-01 : f32
    %396 = vector.broadcast %cst_149 : f32 to vector<8x256xf32>
    %397 = arith.mulf %396, %395 : vector<8x256xf32>
    %cst_150 = arith.constant 5.000000e-01 : f32
    %398 = vector.broadcast %cst_150 : f32 to vector<8x256xf32>
    %399 = arith.addf %397, %398 : vector<8x256xf32>
    %400 = vector.extract_strided_slice %399 {offsets = [0, 0], sizes = [8, 64], strides = [1, 1]} : vector<8x256xf32> to vector<8x64xf32>
    %401 = vector.extract_strided_slice %399 {offsets = [0, 64], sizes = [8, 64], strides = [1, 1]} : vector<8x256xf32> to vector<8x64xf32>
    %402 = vector.extract_strided_slice %395 {offsets = [0, 128], sizes = [8, 64], strides = [1, 1]} : vector<8x256xf32> to vector<8x64xf32>
    %403 = vector.extract_strided_slice %399 {offsets = [0, 192], sizes = [8, 64], strides = [1, 1]} : vector<8x256xf32> to vector<8x64xf32>
    %404 = arith.mulf %401, %384 : vector<8x64xf32>
    %405 = arith.mulf %400, %402 : vector<8x64xf32>
    %406 = arith.addf %404, %405 : vector<8x64xf32>
    %407 = math.tanh %406 : vector<8x64xf32>
    %408 = arith.mulf %403, %407 : vector<8x64xf32>
    %409 = arith.truncf %408 : vector<8x64xf32> to vector<8x64xbf16>
    %410 = vector.extract_strided_slice %408 {offsets = [0, 0], sizes = [8, 32], strides = [1, 1]} : vector<8x64xf32> to vector<8x32xf32>
    %c24_151 = arith.constant 24 : index
    %c64_152 = arith.constant 64 : index
    %411 = vector.load %arg15[%c24_151, %c64_152] : memref<64x128xf32, #tpu.memory_space<vmem>>, vector<8x32xf32>
    tpu.vector_store %arg15[%c24_151, %c64_152], %410 {strides = array<i32>} : memref<64x128xf32, #tpu.memory_space<vmem>>, vector<8x32xf32>,
    %412 = vector.extract_strided_slice %408 {offsets = [0, 32], sizes = [8, 32], strides = [1, 1]} : vector<8x64xf32> to vector<8x32xf32>
    %c32_153 = arith.constant 32 : index
    %c96_154 = arith.constant 96 : index
    %413 = vector.load %arg15[%c32_153, %c96_154] : memref<64x128xf32, #tpu.memory_space<vmem>>, vector<8x32xf32>
    tpu.vector_store %arg15[%c32_153, %c96_154], %412 {strides = array<i32>} : memref<64x128xf32, #tpu.memory_space<vmem>>, vector<8x32xf32>,
    %cst_155 = arith.constant dense<0.000000e+00> : vector<8x256xf32>
    %414 = tpu.matmul %409, %323, %cst_155 {dimension_numbers = #tpu.dot_dimension_numbers<[1], [0], [0], [1], [0, 0, 1, 1], [], []>} : vector<8x64xbf16>, vector<64x256xbf16>, vector<8x256xf32> -> vector<8x256xf32>
    %c32_156 = arith.constant 32 : index
    %c0_157 = arith.constant 0 : index
    %415 = vector.load %arg14[%c32_156, %c0_157] : memref<64x256xf32, #tpu.memory_space<vmem>>, vector<8x256xf32>
    %416 = arith.addf %415, %414 : vector<8x256xf32>
    %417 = math.tanh %416 : vector<8x256xf32>
    %cst_158 = arith.constant 5.000000e-01 : f32
    %418 = vector.broadcast %cst_158 : f32 to vector<8x256xf32>
    %419 = arith.mulf %418, %417 : vector<8x256xf32>
    %cst_159 = arith.constant 5.000000e-01 : f32
    %420 = vector.broadcast %cst_159 : f32 to vector<8x256xf32>
    %421 = arith.addf %419, %420 : vector<8x256xf32>
    %422 = vector.extract_strided_slice %421 {offsets = [0, 0], sizes = [8, 64], strides = [1, 1]} : vector<8x256xf32> to vector<8x64xf32>
    %423 = vector.extract_strided_slice %421 {offsets = [0, 64], sizes = [8, 64], strides = [1, 1]} : vector<8x256xf32> to vector<8x64xf32>
    %424 = vector.extract_strided_slice %417 {offsets = [0, 128], sizes = [8, 64], strides = [1, 1]} : vector<8x256xf32> to vector<8x64xf32>
    %425 = vector.extract_strided_slice %421 {offsets = [0, 192], sizes = [8, 64], strides = [1, 1]} : vector<8x256xf32> to vector<8x64xf32>
    %426 = arith.mulf %423, %406 : vector<8x64xf32>
    %427 = arith.mulf %422, %424 : vector<8x64xf32>
    %428 = arith.addf %426, %427 : vector<8x64xf32>
    %429 = math.tanh %428 : vector<8x64xf32>
    %430 = arith.mulf %425, %429 : vector<8x64xf32>
    %431 = arith.truncf %430 : vector<8x64xf32> to vector<8x64xbf16>
    %432 = vector.extract_strided_slice %430 {offsets = [0, 0], sizes = [8, 32], strides = [1, 1]} : vector<8x64xf32> to vector<8x32xf32>
    %c32_160 = arith.constant 32 : index
    %c64_161 = arith.constant 64 : index
    %433 = vector.load %arg15[%c32_160, %c64_161] : memref<64x128xf32, #tpu.memory_space<vmem>>, vector<8x32xf32>
    tpu.vector_store %arg15[%c32_160, %c64_161], %432 {strides = array<i32>} : memref<64x128xf32, #tpu.memory_space<vmem>>, vector<8x32xf32>,
    %434 = vector.extract_strided_slice %430 {offsets = [0, 32], sizes = [8, 32], strides = [1, 1]} : vector<8x64xf32> to vector<8x32xf32>
    %c24_162 = arith.constant 24 : index
    %c96_163 = arith.constant 96 : index
    %435 = vector.load %arg15[%c24_162, %c96_163] : memref<64x128xf32, #tpu.memory_space<vmem>>, vector<8x32xf32>
    tpu.vector_store %arg15[%c24_162, %c96_163], %434 {strides = array<i32>} : memref<64x128xf32, #tpu.memory_space<vmem>>, vector<8x32xf32>,
    %cst_164 = arith.constant dense<0.000000e+00> : vector<8x256xf32>
    %436 = tpu.matmul %431, %323, %cst_164 {dimension_numbers = #tpu.dot_dimension_numbers<[1], [0], [0], [1], [0, 0, 1, 1], [], []>} : vector<8x64xbf16>, vector<64x256xbf16>, vector<8x256xf32> -> vector<8x256xf32>
    %c40_165 = arith.constant 40 : index
    %c0_166 = arith.constant 0 : index
    %437 = vector.load %arg14[%c40_165, %c0_166] : memref<64x256xf32, #tpu.memory_space<vmem>>, vector<8x256xf32>
    %438 = arith.addf %437, %436 : vector<8x256xf32>
    %439 = math.tanh %438 : vector<8x256xf32>
    %cst_167 = arith.constant 5.000000e-01 : f32
    %440 = vector.broadcast %cst_167 : f32 to vector<8x256xf32>
    %441 = arith.mulf %440, %439 : vector<8x256xf32>
    %cst_168 = arith.constant 5.000000e-01 : f32
    %442 = vector.broadcast %cst_168 : f32 to vector<8x256xf32>
    %443 = arith.addf %441, %442 : vector<8x256xf32>
    %444 = vector.extract_strided_slice %443 {offsets = [0, 0], sizes = [8, 64], strides = [1, 1]} : vector<8x256xf32> to vector<8x64xf32>
    %445 = vector.extract_strided_slice %443 {offsets = [0, 64], sizes = [8, 64], strides = [1, 1]} : vector<8x256xf32> to vector<8x64xf32>
    %446 = vector.extract_strided_slice %439 {offsets = [0, 128], sizes = [8, 64], strides = [1, 1]} : vector<8x256xf32> to vector<8x64xf32>
    %447 = vector.extract_strided_slice %443 {offsets = [0, 192], sizes = [8, 64], strides = [1, 1]} : vector<8x256xf32> to vector<8x64xf32>
    %448 = arith.mulf %445, %428 : vector<8x64xf32>
    %449 = arith.mulf %444, %446 : vector<8x64xf32>
    %450 = arith.addf %448, %449 : vector<8x64xf32>
    %451 = math.tanh %450 : vector<8x64xf32>
    %452 = arith.mulf %447, %451 : vector<8x64xf32>
    %453 = arith.truncf %452 : vector<8x64xf32> to vector<8x64xbf16>
    %454 = vector.extract_strided_slice %452 {offsets = [0, 0], sizes = [8, 32], strides = [1, 1]} : vector<8x64xf32> to vector<8x32xf32>
    %c40_169 = arith.constant 40 : index
    %c64_170 = arith.constant 64 : index
    %455 = vector.load %arg15[%c40_169, %c64_170] : memref<64x128xf32, #tpu.memory_space<vmem>>, vector<8x32xf32>
    tpu.vector_store %arg15[%c40_169, %c64_170], %454 {strides = array<i32>} : memref<64x128xf32, #tpu.memory_space<vmem>>, vector<8x32xf32>,
    %456 = vector.extract_strided_slice %452 {offsets = [0, 32], sizes = [8, 32], strides = [1, 1]} : vector<8x64xf32> to vector<8x32xf32>
    %c16_171 = arith.constant 16 : index
    %c96_172 = arith.constant 96 : index
    %457 = vector.load %arg15[%c16_171, %c96_172] : memref<64x128xf32, #tpu.memory_space<vmem>>, vector<8x32xf32>
    tpu.vector_store %arg15[%c16_171, %c96_172], %456 {strides = array<i32>} : memref<64x128xf32, #tpu.memory_space<vmem>>, vector<8x32xf32>,
    %cst_173 = arith.constant dense<0.000000e+00> : vector<8x256xf32>
    %458 = tpu.matmul %453, %323, %cst_173 {dimension_numbers = #tpu.dot_dimension_numbers<[1], [0], [0], [1], [0, 0, 1, 1], [], []>} : vector<8x64xbf16>, vector<64x256xbf16>, vector<8x256xf32> -> vector<8x256xf32>
    %c48_174 = arith.constant 48 : index
    %c0_175 = arith.constant 0 : index
    %459 = vector.load %arg14[%c48_174, %c0_175] : memref<64x256xf32, #tpu.memory_space<vmem>>, vector<8x256xf32>
    %460 = arith.addf %459, %458 : vector<8x256xf32>
    %461 = math.tanh %460 : vector<8x256xf32>
    %cst_176 = arith.constant 5.000000e-01 : f32
    %462 = vector.broadcast %cst_176 : f32 to vector<8x256xf32>
    %463 = arith.mulf %462, %461 : vector<8x256xf32>
    %cst_177 = arith.constant 5.000000e-01 : f32
    %464 = vector.broadcast %cst_177 : f32 to vector<8x256xf32>
    %465 = arith.addf %463, %464 : vector<8x256xf32>
    %466 = vector.extract_strided_slice %465 {offsets = [0, 0], sizes = [8, 64], strides = [1, 1]} : vector<8x256xf32> to vector<8x64xf32>
    %467 = vector.extract_strided_slice %465 {offsets = [0, 64], sizes = [8, 64], strides = [1, 1]} : vector<8x256xf32> to vector<8x64xf32>
    %468 = vector.extract_strided_slice %461 {offsets = [0, 128], sizes = [8, 64], strides = [1, 1]} : vector<8x256xf32> to vector<8x64xf32>
    %469 = vector.extract_strided_slice %465 {offsets = [0, 192], sizes = [8, 64], strides = [1, 1]} : vector<8x256xf32> to vector<8x64xf32>
    %470 = arith.mulf %467, %450 : vector<8x64xf32>
    %471 = arith.mulf %466, %468 : vector<8x64xf32>
    %472 = arith.addf %470, %471 : vector<8x64xf32>
    %473 = math.tanh %472 : vector<8x64xf32>
    %474 = arith.mulf %469, %473 : vector<8x64xf32>
    %475 = arith.truncf %474 : vector<8x64xf32> to vector<8x64xbf16>
    %476 = vector.extract_strided_slice %474 {offsets = [0, 0], sizes = [8, 32], strides = [1, 1]} : vector<8x64xf32> to vector<8x32xf32>
    %c48_178 = arith.constant 48 : index
    %c64_179 = arith.constant 64 : index
    %477 = vector.load %arg15[%c48_178, %c64_179] : memref<64x128xf32, #tpu.memory_space<vmem>>, vector<8x32xf32>
    tpu.vector_store %arg15[%c48_178, %c64_179], %476 {strides = array<i32>} : memref<64x128xf32, #tpu.memory_space<vmem>>, vector<8x32xf32>,
    %478 = vector.extract_strided_slice %474 {offsets = [0, 32], sizes = [8, 32], strides = [1, 1]} : vector<8x64xf32> to vector<8x32xf32>
    %c8_180 = arith.constant 8 : index
    %c96_181 = arith.constant 96 : index
    %479 = vector.load %arg15[%c8_180, %c96_181] : memref<64x128xf32, #tpu.memory_space<vmem>>, vector<8x32xf32>
    tpu.vector_store %arg15[%c8_180, %c96_181], %478 {strides = array<i32>} : memref<64x128xf32, #tpu.memory_space<vmem>>, vector<8x32xf32>,
    %cst_182 = arith.constant dense<0.000000e+00> : vector<8x256xf32>
    %480 = tpu.matmul %475, %323, %cst_182 {dimension_numbers = #tpu.dot_dimension_numbers<[1], [0], [0], [1], [0, 0, 1, 1], [], []>} : vector<8x64xbf16>, vector<64x256xbf16>, vector<8x256xf32> -> vector<8x256xf32>
    %c56_183 = arith.constant 56 : index
    %c0_184 = arith.constant 0 : index
    %481 = vector.load %arg14[%c56_183, %c0_184] : memref<64x256xf32, #tpu.memory_space<vmem>>, vector<8x256xf32>
    %482 = arith.addf %481, %480 : vector<8x256xf32>
    %483 = math.tanh %482 : vector<8x256xf32>
    %cst_185 = arith.constant 5.000000e-01 : f32
    %484 = vector.broadcast %cst_185 : f32 to vector<8x256xf32>
    %485 = arith.mulf %484, %483 : vector<8x256xf32>
    %cst_186 = arith.constant 5.000000e-01 : f32
    %486 = vector.broadcast %cst_186 : f32 to vector<8x256xf32>
    %487 = arith.addf %485, %486 : vector<8x256xf32>
    %488 = vector.extract_strided_slice %487 {offsets = [0, 0], sizes = [8, 64], strides = [1, 1]} : vector<8x256xf32> to vector<8x64xf32>
    %489 = vector.extract_strided_slice %487 {offsets = [0, 64], sizes = [8, 64], strides = [1, 1]} : vector<8x256xf32> to vector<8x64xf32>
    %490 = vector.extract_strided_slice %483 {offsets = [0, 128], sizes = [8, 64], strides = [1, 1]} : vector<8x256xf32> to vector<8x64xf32>
    %491 = vector.extract_strided_slice %487 {offsets = [0, 192], sizes = [8, 64], strides = [1, 1]} : vector<8x256xf32> to vector<8x64xf32>
    %492 = arith.mulf %489, %472 : vector<8x64xf32>
    %493 = arith.mulf %488, %490 : vector<8x64xf32>
    %494 = arith.addf %492, %493 : vector<8x64xf32>
    %495 = math.tanh %494 : vector<8x64xf32>
    %496 = arith.mulf %491, %495 : vector<8x64xf32>
    %497 = vector.extract_strided_slice %496 {offsets = [0, 0], sizes = [8, 32], strides = [1, 1]} : vector<8x64xf32> to vector<8x32xf32>
    %c56_187 = arith.constant 56 : index
    %c64_188 = arith.constant 64 : index
    %498 = vector.load %arg15[%c56_187, %c64_188] : memref<64x128xf32, #tpu.memory_space<vmem>>, vector<8x32xf32>
    tpu.vector_store %arg15[%c56_187, %c64_188], %497 {strides = array<i32>} : memref<64x128xf32, #tpu.memory_space<vmem>>, vector<8x32xf32>,
    %499 = vector.extract_strided_slice %496 {offsets = [0, 32], sizes = [8, 32], strides = [1, 1]} : vector<8x64xf32> to vector<8x32xf32>
    %c0_189 = arith.constant 0 : index
    %c96_190 = arith.constant 96 : index
    %500 = vector.load %arg15[%c0_189, %c96_190] : memref<64x128xf32, #tpu.memory_space<vmem>>, vector<8x32xf32>
    tpu.vector_store %arg15[%c0_189, %c96_190], %499 {strides = array<i32>} : memref<64x128xf32, #tpu.memory_space<vmem>>, vector<8x32xf32>,
    %c0_191 = arith.constant 0 : index
    %c0_192 = arith.constant 0 : index
    %501 = vector.load %arg15[%c0_191, %c0_192] : memref<64x128xf32, #tpu.memory_space<vmem>>, vector<64x128xf32>
    %502 = arith.truncf %501 : vector<64x128xf32> to vector<64x128xbf16>
    %c0_193 = arith.constant 0 : index
    %c0_194 = arith.constant 0 : index
    %503 = vector.load %arg8[%c0_193, %c0_194] : memref<128x64xbf16, #tpu.memory_space<vmem>>, vector<128x64xbf16>
    %cst_195 = arith.constant dense<0.000000e+00> : vector<64x64xf32>
    %504 = tpu.matmul %502, %503, %cst_195 {dimension_numbers = #tpu.dot_dimension_numbers<[1], [0], [0], [1], [0, 0, 1, 1], [], []>} : vector<64x128xbf16>, vector<128x64xbf16>, vector<64x64xf32> -> vector<64x64xf32>
    %c0_196 = arith.constant 0 : index
    %c0_197 = arith.constant 0 : index
    %505 = vector.load %arg9[%c0_196, %c0_197] : memref<2x64xf32, #tpu.memory_space<vmem>>, vector<1x64xf32>
    %506 = vector.broadcast %505 : vector<1x64xf32> to vector<64x64xf32>
    %507 = arith.mulf %504, %506 : vector<64x64xf32>
    %c1_198 = arith.constant 1 : index
    %c0_199 = arith.constant 0 : index
    %508 = vector.load %arg9[%c1_198, %c0_199] : memref<2x64xf32, #tpu.memory_space<vmem>>, vector<1x64xf32>
    %509 = vector.broadcast %508 : vector<1x64xf32> to vector<64x64xf32>
    %510 = arith.addf %507, %509 : vector<64x64xf32>
    %cst_200 = arith.constant 0.000000e+00 : f32
    %511 = vector.broadcast %cst_200 : f32 to vector<64x64xf32>
    %512 = arith.maximumf %510, %511 : vector<64x64xf32>
    %513 = arith.truncf %512 : vector<64x64xf32> to vector<64x64xbf16>
    %c0_201 = arith.constant 0 : index
    %c0_202 = arith.constant 0 : index
    %514 = vector.load %arg10[%c0_201, %c0_202] : memref<64x8xbf16, #tpu.memory_space<vmem>>, vector<64x8xbf16>
    %cst_203 = arith.constant dense<0.000000e+00> : vector<64x8xf32>
    %515 = tpu.matmul %513, %514, %cst_203 {dimension_numbers = #tpu.dot_dimension_numbers<[1], [0], [0], [1], [0, 0, 1, 1], [], []>} : vector<64x64xbf16>, vector<64x8xbf16>, vector<64x8xf32> -> vector<64x8xf32>
    %c0_204 = arith.constant 0 : index
    %c0_205 = arith.constant 0 : index
    %516 = vector.load %arg11[%c0_204, %c0_205] : memref<1x8xf32, #tpu.memory_space<vmem>>, vector<1x8xf32>
    %517 = vector.broadcast %516 : vector<1x8xf32> to vector<64x8xf32>
    %518 = arith.addf %515, %517 : vector<64x8xf32>
    %c0_206 = arith.constant 0 : index
    %c0_207 = arith.constant 0 : index
    %c0_208 = arith.constant 0 : index
    %519 = vector.load %arg13[%c0_206, %c0_207, %c0_208] : memref<1x64x8xf32, #tpu.memory_space<vmem>>, vector<1x64x8xf32>
    %520 = vector.shape_cast %519 : vector<1x64x8xf32> to vector<64x8xf32>
    %521 = vector.shape_cast %518 : vector<64x8xf32> to vector<1x64x8xf32>
    tpu.vector_store %arg13[%c0_206, %c0_207, %c0_208], %521 {strides = array<i32>} : memref<1x64x8xf32, #tpu.memory_space<vmem>>, vector<1x64x8xf32>,
    return
  }
  func.func @transform_0(%arg0: i32) -> (i32, i32, i32) {
    %c0_i32 = arith.constant 0 : i32
    %c0_i32_0 = arith.constant 0 : i32
    %c0_i32_1 = arith.constant 0 : i32
    return %arg0, %c0_i32, %c0_i32_0 : i32, i32, i32
  }
  func.func @transform_1(%arg0: i32) -> (i32, i32) {
    %c0_i32 = arith.constant 0 : i32
    %c0_i32_0 = arith.constant 0 : i32
    %c0_i32_1 = arith.constant 0 : i32
    return %c0_i32, %c0_i32_0 : i32, i32
  }
  func.func @transform_2(%arg0: i32) -> (i32, i32) {
    %c0_i32 = arith.constant 0 : i32
    %c0_i32_0 = arith.constant 0 : i32
    %c0_i32_1 = arith.constant 0 : i32
    return %c0_i32, %c0_i32_0 : i32, i32
  }
  func.func @transform_3(%arg0: i32) -> (i32, i32) {
    %c0_i32 = arith.constant 0 : i32
    %c0_i32_0 = arith.constant 0 : i32
    %c0_i32_1 = arith.constant 0 : i32
    return %c0_i32, %c0_i32_0 : i32, i32
  }
  func.func @transform_4(%arg0: i32) -> (i32, i32) {
    %c0_i32 = arith.constant 0 : i32
    %c0_i32_0 = arith.constant 0 : i32
    %c0_i32_1 = arith.constant 0 : i32
    return %c0_i32, %c0_i32_0 : i32, i32
  }
  func.func @transform_5(%arg0: i32) -> (i32, i32) {
    %c0_i32 = arith.constant 0 : i32
    %c0_i32_0 = arith.constant 0 : i32
    %c0_i32_1 = arith.constant 0 : i32
    return %c0_i32, %c0_i32_0 : i32, i32
  }
  func.func @transform_6(%arg0: i32) -> (i32, i32) {
    %c0_i32 = arith.constant 0 : i32
    %c0_i32_0 = arith.constant 0 : i32
    %c0_i32_1 = arith.constant 0 : i32
    return %c0_i32, %c0_i32_0 : i32, i32
  }
  func.func @transform_7(%arg0: i32) -> (i32, i32) {
    %c0_i32 = arith.constant 0 : i32
    %c0_i32_0 = arith.constant 0 : i32
    %c0_i32_1 = arith.constant 0 : i32
    return %c0_i32, %c0_i32_0 : i32, i32
  }
  func.func @transform_8(%arg0: i32) -> (i32, i32) {
    %c0_i32 = arith.constant 0 : i32
    %c0_i32_0 = arith.constant 0 : i32
    %c0_i32_1 = arith.constant 0 : i32
    return %c0_i32, %c0_i32_0 : i32, i32
  }
  func.func @transform_9(%arg0: i32) -> (i32, i32) {
    %c0_i32 = arith.constant 0 : i32
    %c0_i32_0 = arith.constant 0 : i32
    %c0_i32_1 = arith.constant 0 : i32
    return %c0_i32, %c0_i32_0 : i32, i32
  }
  func.func @transform_10(%arg0: i32) -> (i32, i32) {
    %c0_i32 = arith.constant 0 : i32
    %c0_i32_0 = arith.constant 0 : i32
    %c0_i32_1 = arith.constant 0 : i32
    return %c0_i32, %c0_i32_0 : i32, i32
  }
  func.func @transform_11(%arg0: i32) -> (i32, i32) {
    %c0_i32 = arith.constant 0 : i32
    %c0_i32_0 = arith.constant 0 : i32
    %c0_i32_1 = arith.constant 0 : i32
    return %c0_i32, %c0_i32_0 : i32, i32
  }
  func.func @transform_12(%arg0: i32) -> (i32, i32, i32) {
    %c0_i32 = arith.constant 0 : i32
    %c0_i32_0 = arith.constant 0 : i32
    %c0_i32_1 = arith.constant 0 : i32
    return %arg0, %c0_i32, %c0_i32_0 : i32, i32, i32
  }
}

</mosaic_0001>

<llo_original>
// kernel: tile.6
$region0: #{tile.6}
  #allocation0 [shape = 's32[1]{0}', space=sflag, size = 0x4, scoped, tag = 'scoped memory for tile.6']
  %s0 = inlined_call_operand.vmem [shape: f32[64], index: 0, kind: input, shape index: {}]
  %s1 = inlined_call_operand.vmem [shape: f32[4,64], index: 1, kind: output, shape index: {}]
  // Predicated region
  $region2: #{tile.6} parent=0 // pred_check
    _
  $region3: #{tile.6} parent=0 // pred_check_branch
    %3 = sbr.rel (0) target = $region5
  $region4: #{tile.6} parent=0 // pred_region
    _
  $region5: #{tile.6} parent=0 // pred_fallthru
    _
  %v4 = vld [vmem:[%s0] ss:$0 sm:$0xff]
  %5 = vst [vmem:[%s1] sm:$0xf] %v4

// kernel: tile.7
$region0: #{tile.7}
  %s0 = inlined_call_operand.vmem [shape: f32[4,64], index: 0, kind: input, shape index: {}]
  %s1 = inlined_call_operand.vmem [shape: f32[1,256], index: 1, kind: output, shape index: {}]
  $region1: #{tile.7} parent=0
    #allocation0 [shape = 'u8[8192]{0}', space=vmem, size = 0x2000, scoped, tag = 'scoped mem for output reshape']
    #allocation1 [shape = 'u8[4096]{0}', space=vmem, size = 0x1000, scoped, tag = 'scoped mem for input reshape']
    %s3 = ssub.s32 16, 1
    %v4 = vld [vmem:[%s0] sm:%s3]
    %5 = vst [vmem:[#allocation1] sm:%s3] %v4
    %s6 = smov 3
    %v7 = vld [vmem:[#allocation1] ss:$2 sm:%s6]
    %vm8 = vcmask 523264
    %9 = vst.msk [vmem:[#allocation0] ss:$8 sm:$0x3] %vm8, %v7
    %s10 = scalar_lea.vmem [#allocation1], 1
    %s11 = smov 3
    %v12 = vld [vmem:[%s10] ss:$2 sm:%s11]
    %13 = vrot.lane.b32.xlu0 %v12, 64
    %v14 = vpop.permute.xlu0 %13
    %vm15 = vcmask 1048064
    %16 = vst.msk [vmem:[#allocation0] ss:$8 sm:$0x3] %vm15, %v14
    %s18 = ssub.s32 2, 1
    %v19 = vld [vmem:[#allocation0] sm:%s18]
    %s21 = ssub.s32 2, 1
    %22 = vst [vmem:[%s1] sm:%s21] %v19
    %s23 = scalar_lea.vmem [#allocation0], 8
    %v24 = vld [vmem:[%s23] sm:%s18]
    %s26 = ssub.s32 2, 1
    %s27 = scalar_lea.vmem %s1, 1
    %28 = vst [vmem:[%s27] sm:%s26] %v24

// kernel: pallas_forward.1
$region0: #{pallas_forward.1}
  #allocation0 [shape = 'u32[]', space=smem, size = 0x4, offset = 0x4, fixed_abs, tag = 'smem constant byte address 0x4 - core index']
  #allocation1 [shape = 'u32[72,128]{1,0:T(1,128)}', space=vmem, size = 0x9000, scoped, tag = 'internal scratch']
  #allocation2 [shape = 'f32[64,256]{1,0:T(8,128)}', space=vmem, size = 0x10000, scoped, tag = 'scratch operand']
  #allocation3 [shape = 'f32[64,128]{1,0:T(8,128)}', space=vmem, size = 0x8000, scoped, tag = 'scratch operand']
  %s0 = inlined_call_operand.vmem [shape: f32[1,64,16], index: 0, kind: input, shape index: {}]
  %s1 = inlined_call_operand.vmem [shape: bf16[16,256], index: 1, kind: input, shape index: {}]
  %s2 = inlined_call_operand.vmem [shape: bf16[64,256], index: 2, kind: input, shape index: {}]
  %s3 = inlined_call_operand.vmem [shape: f32[1,256], index: 3, kind: input, shape index: {}]
  %s4 = inlined_call_operand.vmem [shape: bf16[64,256], index: 4, kind: input, shape index: {}]
  %s5 = inlined_call_operand.vmem [shape: bf16[64,256], index: 5, kind: input, shape index: {}]
  %s6 = inlined_call_operand.vmem [shape: f32[1,256], index: 6, kind: input, shape index: {}]
  %s7 = inlined_call_operand.vmem [shape: bf16[128,64], index: 7, kind: input, shape index: {}]
  %s8 = inlined_call_operand.vmem [shape: f32[2,64], index: 8, kind: input, shape index: {}]
  %s9 = inlined_call_operand.vmem [shape: bf16[64,8], index: 9, kind: input, shape index: {}]
  %s10 = inlined_call_operand.vmem [shape: f32[1,8], index: 10, kind: input, shape index: {}]
  %s11 = inlined_call_operand.vmem [shape: f32[2,256], index: 11, kind: input, shape index: {}]
  %s12 = inlined_call_operand.vmem [shape: f32[1,64,8], index: 12, kind: output, shape index: {}]
  %s13 = sld [smem:[#allocation0]]
  $region58: #{pallas_forward.1} parent=0
    _
  %s15 = ssub.s32 1, %s13
  %s16 = scalar_select 0, %s15, %s13
  // Predicated region
  $region2: #{pallas_forward.1} parent=0 // pred_check
    _
  $region3: #{pallas_forward.1} parent=0 // pred_check_branch
    %18 = sbr.rel (0) target = $region5
  $region4: #{pallas_forward.1} parent=0 // pred_region
    _
  $region5: #{pallas_forward.1} parent=0 // pred_fallthru
    _
  // Predicated region
  $region6: #{pallas_forward.1} parent=0 // pred_check
    _
  $region7: #{pallas_forward.1} parent=0 // pred_check_branch
    %20 = sbr.rel (0) target = $region9
  $region8: #{pallas_forward.1} parent=0 // pred_region
    _
  $region9: #{pallas_forward.1} parent=0 // pred_fallthru
    _
  // Predicated region
  $region10: #{pallas_forward.1} parent=0 // pred_check
    _
  $region11: #{pallas_forward.1} parent=0 // pred_check_branch
    %22 = sbr.rel (0) target = $region13
  $region12: #{pallas_forward.1} parent=0 // pred_region
    _
  $region13: #{pallas_forward.1} parent=0 // pred_fallthru
    _
  // Predicated region
  $region14: #{pallas_forward.1} parent=0 // pred_check
    _
  $region15: #{pallas_forward.1} parent=0 // pred_check_branch
    %24 = sbr.rel (0) target = $region17
  $region16: #{pallas_forward.1} parent=0 // pred_region
    _
  $region17: #{pallas_forward.1} parent=0 // pred_fallthru
    _
  // Predicated region
  $region18: #{pallas_forward.1} parent=0 // pred_check
    _
  $region19: #{pallas_forward.1} parent=0 // pred_check_branch
    %26 = sbr.rel (0) target = $region21
  $region20: #{pallas_forward.1} parent=0 // pred_region
    _
  $region21: #{pallas_forward.1} parent=0 // pred_fallthru
    _
  // Predicated region
  $region22: #{pallas_forward.1} parent=0 // pred_check
    _
  $region23: #{pallas_forward.1} parent=0 // pred_check_branch
    %28 = sbr.rel (0) target = $region25
  $region24: #{pallas_forward.1} parent=0 // pred_region
    _
  $region25: #{pallas_forward.1} parent=0 // pred_fallthru
    _
  // Predicated region
  $region26: #{pallas_forward.1} parent=0 // pred_check
    _
  $region27: #{pallas_forward.1} parent=0 // pred_check_branch
    %30 = sbr.rel (0) target = $region29
  $region28: #{pallas_forward.1} parent=0 // pred_region
    _
  $region29: #{pallas_forward.1} parent=0 // pred_fallthru
    _
  // Predicated region
  $region30: #{pallas_forward.1} parent=0 // pred_check
    _
  $region31: #{pallas_forward.1} parent=0 // pred_check_branch
    %32 = sbr.rel (0) target = $region33
  $region32: #{pallas_forward.1} parent=0 // pred_region
    _
  $region33: #{pallas_forward.1} parent=0 // pred_fallthru
    _
  // Predicated region
  $region34: #{pallas_forward.1} parent=0 // pred_check
    _
  $region35: #{pallas_forward.1} parent=0 // pred_check_branch
    %34 = sbr.rel (0) target = $region37
  $region36: #{pallas_forward.1} parent=0 // pred_region
    _
  $region37: #{pallas_forward.1} parent=0 // pred_fallthru
    _
  // Predicated region
  $region38: #{pallas_forward.1} parent=0 // pred_check
    _
  $region39: #{pallas_forward.1} parent=0 // pred_check_branch
    %36 = sbr.rel (0) target = $region41
  $region40: #{pallas_forward.1} parent=0 // pred_region
    _
  $region41: #{pallas_forward.1} parent=0 // pred_fallthru
    _
  // Predicated region
  $region42: #{pallas_forward.1} parent=0 // pred_check
    _
  $region43: #{pallas_forward.1} parent=0 // pred_check_branch
    %38 = sbr.rel (0) target = $region45
  $region44: #{pallas_forward.1} parent=0 // pred_region
    _
  $region45: #{pallas_forward.1} parent=0 // pred_fallthru
    _
  // Predicated region
  $region46: #{pallas_forward.1} parent=0 // pred_check
    _
  $region47: #{pallas_forward.1} parent=0 // pred_check_branch
    %40 = sbr.rel (0) target = $region49
  $region48: #{pallas_forward.1} parent=0 // pred_region
    _
  $region49: #{pallas_forward.1} parent=0 // pred_fallthru
    _
  %v42 = vld [vmem:[%s11] ss:$2 sm:$0x3]
  %s43 = scalar_lea.vmem %s11, 1
  %v44 = vld [vmem:[%s43] ss:$2 sm:$0x3]
  %v45 = vld [vmem:[%s0] sm:$0xff]
  %v46 = vld [vmem:[%s0 + $0x8] sm:$0xff]
  %v47 = vld [vmem:[%s0 + $0x10] sm:$0xff]
  %v48 = vld [vmem:[%s0 + $0x18] sm:$0xff]
  %v49 = vld [vmem:[%s0 + $0x20] sm:$0xff]
  %v50 = vld [vmem:[%s0 + $0x28] sm:$0xff]
  %v51 = vld [vmem:[%s0 + $0x30] sm:$0xff]
  %v52 = vld [vmem:[%s0 + $0x38] sm:$0xff]
  %v53 = vpack.c.bf16 %v46, %v45
  %v54 = vpack.c.bf16 %v48, %v47
  %v55 = vpack.c.bf16 %v50, %v49
  %v56 = vpack.c.bf16 %v52, %v51
  %v57 = vld [vmem:[%s1] sm:$0xff]
  %v58 = vld [vmem:[%s1 + $0x8] sm:$0xff]
  %v59 = vld [vmem:[%s3] sm:$0x3]
  %v61 = vperm.slane %v59, 0
  %v62 = vperm.slane %v59, 1
  %v67 = vunpack.c.l.b16 %v57
  %v68 = vunpack.c.h.b16 %v57
  %v69 = vunpack.c.l.b16 %v58
  %v70 = vunpack.c.h.b16 %v58
  %v71 = vpack.c.b16 %v69, %v67
  %v72 = vpack.c.b16 %v70, %v68
  %vm75 = vcmask 130048
  %v77 = vsel %vm75, %v53, 0
  %v80 = vsel %vm75, %v54, 0
  %v83 = vsel %vm75, %v55, 0
  %v86 = vsel %vm75, %v56, 0
  %88 = vmatpush.bf16.msra.mxu0 0
  %89 = vmatpush.bf16.msra.mxu0 0
  %90 = vmatpush.bf16.msra.mxu0 0
  %91 = vmatpush.bf16.msra.mxu0 0
  %92 = vmatpush.bf16.msra.mxu0 0
  %93 = vmatpush.bf16.msra.mxu0 0
  %94 = vmatpush.bf16.msra.mxu0 0
  %95 = vmatpush.bf16.msra.mxu0 %v71
  %96 = vmatmul.bf16.gmra.mxu0 %v77
  %v97 = vpop.f32.mrf.mxu0
  %v98 = vadd.f32 %v61, %v97
  %v99 = vpop.f32.mrf.mxu0
  %v100 = vadd.f32 %v61, %v99
  %101 = vmatmul.bf16.gmra.mxu0 %v80
  %v102 = vpop.f32.mrf.mxu0
  %v103 = vadd.f32 %v61, %v102
  %v104 = vpop.f32.mrf.mxu0
  %v105 = vadd.f32 %v61, %v104
  %106 = vmatmul.bf16.gmra.mxu0 %v83
  %v107 = vpop.f32.mrf.mxu0
  %v108 = vadd.f32 %v61, %v107
  %v109 = vpop.f32.mrf.mxu0
  %v110 = vadd.f32 %v61, %v109
  %111 = vmatmul.bf16.gmra.mxu0 %v86
  %v112 = vpop.f32.mrf.mxu0
  %v113 = vadd.f32 %v61, %v112
  %v114 = vpop.f32.mrf.mxu0
  %v115 = vadd.f32 %v61, %v114
  %116 = vdwg.mxu0
  %117 = vmatpush.bf16.msra.mxu0 0
  %118 = vmatpush.bf16.msra.mxu0 0
  %119 = vmatpush.bf16.msra.mxu0 0
  %120 = vmatpush.bf16.msra.mxu0 0
  %121 = vmatpush.bf16.msra.mxu0 0
  %122 = vmatpush.bf16.msra.mxu0 0
  %123 = vmatpush.bf16.msra.mxu0 0
  %124 = vmatpush.bf16.msra.mxu0 %v72
  %125 = vmatmul.bf16.gmra.mxu0 %v77
  %v126 = vpop.f32.mrf.mxu0
  %v127 = vadd.f32 %v62, %v126
  %v128 = vpop.f32.mrf.mxu0
  %v129 = vadd.f32 %v62, %v128
  %130 = vmatmul.bf16.gmra.mxu0 %v80
  %v131 = vpop.f32.mrf.mxu0
  %v132 = vadd.f32 %v62, %v131
  %v133 = vpop.f32.mrf.mxu0
  %v134 = vadd.f32 %v62, %v133
  %135 = vmatmul.bf16.gmra.mxu0 %v83
  %v136 = vpop.f32.mrf.mxu0
  %v137 = vadd.f32 %v62, %v136
  %v138 = vpop.f32.mrf.mxu0
  %v139 = vadd.f32 %v62, %v138
  %140 = vmatmul.bf16.gmra.mxu0 %v86
  %v141 = vpop.f32.mrf.mxu0
  %v142 = vadd.f32 %v62, %v141
  %v143 = vpop.f32.mrf.mxu0
  %v144 = vadd.f32 %v62, %v143
  %145 = vdwg.mxu0
  %v147 = vperm.slane %v42, 0
  %v148 = vperm.slane %v42, 1
  %v151 = vmul.f32 %v98, %v147
  %v152 = vmul.f32 %v127, %v148
  %v154 = vperm.slane %v44, 0
  %v155 = vperm.slane %v44, 1
  %v158 = vmul.f32 %v115, %v154
  %v159 = vmul.f32 %v144, %v155
  %v160 = vadd.f32 %v151, %v158
  %v161 = vadd.f32 %v152, %v159
  %162 = vst [vmem:[#allocation2] sm:$0xff] %v160
  %163 = vst [vmem:[#allocation2 + $0x8] sm:$0xff] %v161
  %v164 = vmul.f32 %v100, %v147
  %v165 = vmul.f32 %v129, %v148
  %v166 = vmul.f32 %v113, %v154
  %v167 = vmul.f32 %v142, %v155
  %v168 = vadd.f32 %v164, %v166
  %v169 = vadd.f32 %v165, %v167
  %170 = vst [vmem:[#allocation2 + $0x10] sm:$0xff] %v168
  %171 = vst [vmem:[#allocation2 + $0x18] sm:$0xff] %v169
  %v172 = vmul.f32 %v103, %v147
  %v173 = vmul.f32 %v132, %v148
  %v174 = vmul.f32 %v110, %v154
  %v175 = vmul.f32 %v139, %v155
  %v176 = vadd.f32 %v172, %v174
  %v177 = vadd.f32 %v173, %v175
  %178 = vst [vmem:[#allocation2 + $0x20] sm:$0xff] %v176
  %179 = vst [vmem:[#allocation2 + $0x28] sm:$0xff] %v177
  %v180 = vmul.f32 %v105, %v147
  %v181 = vmul.f32 %v134, %v148
  %v182 = vmul.f32 %v108, %v154
  %v183 = vmul.f32 %v137, %v155
  %v184 = vadd.f32 %v180, %v182
  %v185 = vadd.f32 %v181, %v183
  %186 = vst [vmem:[#allocation2 + $0x30] sm:$0xff] %v184
  %187 = vst [vmem:[#allocation2 + $0x38] sm:$0xff] %v185
  %v188 = vmul.f32 %v108, %v147
  %v189 = vmul.f32 %v137, %v148
  %v190 = vmul.f32 %v105, %v154
  %v191 = vmul.f32 %v134, %v155
  %v192 = vadd.f32 %v188, %v190
  %v193 = vadd.f32 %v189, %v191
  %194 = vst [vmem:[#allocation2 + $0x40] sm:$0xff] %v192
  %195 = vst [vmem:[#allocation2 + $0x48] sm:$0xff] %v193
  %v196 = vmul.f32 %v110, %v147
  %v197 = vmul.f32 %v139, %v148
  %v198 = vmul.f32 %v103, %v154
  %v199 = vmul.f32 %v132, %v155
  %v200 = vadd.f32 %v196, %v198
  %v201 = vadd.f32 %v197, %v199
  %202 = vst [vmem:[#allocation2 + $0x50] sm:$0xff] %v200
  %203 = vst [vmem:[#allocation2 + $0x58] sm:$0xff] %v201
  %v204 = vmul.f32 %v113, %v147
  %v205 = vmul.f32 %v142, %v148
  %v206 = vmul.f32 %v100, %v154
  %v207 = vmul.f32 %v129, %v155
  %v208 = vadd.f32 %v204, %v206
  %v209 = vadd.f32 %v205, %v207
  %210 = vst [vmem:[#allocation2 + $0x60] sm:$0xff] %v208
  %211 = vst [vmem:[#allocation2 + $0x68] sm:$0xff] %v209
  %v212 = vmul.f32 %v115, %v147
  %v213 = vmul.f32 %v144, %v148
  %v214 = vmul.f32 %v98, %v154
  %v215 = vmul.f32 %v127, %v155
  %v216 = vadd.f32 %v212, %v214
  %v217 = vadd.f32 %v213, %v215
  %218 = vst [vmem:[#allocation2 + $0x70] sm:$0xff] %v216
  %219 = vst [vmem:[#allocation2 + $0x78] sm:$0xff] %v217
  %v220 = vld [vmem:[%s2] sm:$0xff]
  %v221 = vld [vmem:[%s2 + $0x8] sm:$0xff]
  %v222 = vld [vmem:[%s2 + $0x10] sm:$0xff]
  %v223 = vld [vmem:[%s2 + $0x18] sm:$0xff]
  %v224 = vld [vmem:[%s2 + $0x20] sm:$0xff]
  %v225 = vld [vmem:[%s2 + $0x28] sm:$0xff]
  %v226 = vld [vmem:[%s2 + $0x30] sm:$0xff]
  %v227 = vld [vmem:[%s2 + $0x38] sm:$0xff]
  %v236 = vunpack.c.l.b16 %v220
  %v237 = vunpack.c.h.b16 %v220
  %v238 = vunpack.c.l.b16 %v221
  %v239 = vunpack.c.h.b16 %v221
  %v240 = vunpack.c.l.b16 %v222
  %v241 = vunpack.c.h.b16 %v222
  %v242 = vunpack.c.l.b16 %v223
  %v243 = vunpack.c.h.b16 %v223
  %v244 = vunpack.c.l.b16 %v224
  %v245 = vunpack.c.h.b16 %v224
  %v246 = vunpack.c.l.b16 %v225
  %v247 = vunpack.c.h.b16 %v225
  %v248 = vunpack.c.l.b16 %v226
  %v249 = vunpack.c.h.b16 %v226
  %v250 = vunpack.c.l.b16 %v227
  %v251 = vunpack.c.h.b16 %v227
  %v252 = vpack.c.b16 %v238, %v236
  %v253 = vpack.c.b16 %v239, %v237
  %v254 = vpack.c.b16 %v242, %v240
  %v255 = vpack.c.b16 %v243, %v241
  %v256 = vpack.c.b16 %v246, %v244
  %v257 = vpack.c.b16 %v247, %v245
  %v258 = vpack.c.b16 %v250, %v248
  %v259 = vpack.c.b16 %v251, %v249
  %vm268 = vcmask 523264
  %v270 = vsel %vm268, 0, 0
  %272 = vmatpush.bf16.msra.mxu0 0
  %273 = vmatpush.bf16.msra.mxu0 0
  %274 = vmatpush.bf16.msra.mxu0 0
  %275 = vmatpush.bf16.msra.mxu0 0
  %276 = vmatpush.bf16.msra.mxu0 %v258
  %277 = vmatpush.bf16.msra.mxu0 %v256
  %278 = vmatpush.bf16.msra.mxu0 %v254
  %279 = vmatpush.bf16.msra.mxu0 %v252
  %280 = vmatmul.bf16.gmra.mxu0 %v270
  %v281 = vpop.f32.mrf.mxu0
  %v282 = vadd.f32 0.0, %v281
  %v283 = vpop.f32.mrf.mxu0
  %284 = vdwg.mxu0
  %285 = vmatpush.bf16.msra.mxu0 0
  %286 = vmatpush.bf16.msra.mxu0 0
  %287 = vmatpush.bf16.msra.mxu0 0
  %288 = vmatpush.bf16.msra.mxu0 0
  %289 = vmatpush.bf16.msra.mxu0 %v259
  %290 = vmatpush.bf16.msra.mxu0 %v257
  %291 = vmatpush.bf16.msra.mxu0 %v255
  %292 = vmatpush.bf16.msra.mxu0 %v253
  %293 = vmatmul.bf16.gmra.mxu0 %v270
  %v294 = vpop.f32.mrf.mxu0
  %v295 = vadd.f32 0.0, %v294
  %v296 = vpop.f32.mrf.mxu0
  %297 = vdwg.mxu0
  %v298 = vld [vmem:[#allocation2] sm:$0xff]
  %v299 = vld [vmem:[#allocation2 + $0x8] sm:$0xff]
  %v300 = vadd.f32 %v298, %v282
  %v301 = vadd.f32 %v299, %v295
  %v302 = vtanh.pop %v300
  %v303 = vtanh.pop %v301
  %v304 = vmul.f32 %v302, 0.5
  %v305 = vmul.f32 %v303, 0.5
  %v306 = vadd.f32 %v304, 0.5
  %v307 = vadd.f32 %v305, 0.5
  %v308 = vmul.f32 %v306, 0.0
  %v309 = vmul.f32 %v306, %v303
  %311 = vrot.lane.b32.xlu0 %v309, 64
  %v312 = vpop.permute.xlu0 %311
  %v314 = vadd.f32 %v308, %v312
  %v315 = vtanh.pop %v314
  %v316 = vmul.f32 %v307, %v315
  %v317 = vpack.c.bf16 %v316, %v316
  %319 = vrot.lane.b32.xlu0 %v316, 64
  %v320 = vpop.permute.xlu0 %319
  %vm322 = vcmask 261120
  %323 = vst.msk [vmem:[#allocation3] sm:$0xff] %vm322, %v320
  %vm324 = vcmask 523520
  %325 = vst.msk [vmem:[#allocation3 + $0x38] sm:$0xff] %vm324, %v320
  %327 = vrot.lane.b32.xlu0 %v317, 64
  %v328 = vpop.permute.xlu0 %327
  %v330 = vsel %vm268, %v328, 0
  %332 = vmatpush.bf16.msra.mxu0 0
  %333 = vmatpush.bf16.msra.mxu0 0
  %334 = vmatpush.bf16.msra.mxu0 0
  %335 = vmatpush.bf16.msra.mxu0 0
  %336 = vmatpush.bf16.msra.mxu0 %v258
  %337 = vmatpush.bf16.msra.mxu0 %v256
  %338 = vmatpush.bf16.msra.mxu0 %v254
  %339 = vmatpush.bf16.msra.mxu0 %v252
  %340 = vmatmul.bf16.gmra.mxu0 %v330
  %v341 = vpop.f32.mrf.mxu0
  %v342 = vadd.f32 0.0, %v341
  %v343 = vpop.f32.mrf.mxu0
  %344 = vdwg.mxu0
  %345 = vmatpush.bf16.msra.mxu0 0
  %346 = vmatpush.bf16.msra.mxu0 0
  %347 = vmatpush.bf16.msra.mxu0 0
  %348 = vmatpush.bf16.msra.mxu0 0
  %349 = vmatpush.bf16.msra.mxu0 %v259
  %350 = vmatpush.bf16.msra.mxu0 %v257
  %351 = vmatpush.bf16.msra.mxu0 %v255
  %352 = vmatpush.bf16.msra.mxu0 %v253
  %353 = vmatmul.bf16.gmra.mxu0 %v330
  %v354 = vpop.f32.mrf.mxu0
  %v355 = vadd.f32 0.0, %v354
  %v356 = vpop.f32.mrf.mxu0
  %357 = vdwg.mxu0
  %v358 = vld [vmem:[#allocation2 + $0x10] sm:$0xff]
  %v359 = vld [vmem:[#allocation2 + $0x18] sm:$0xff]
  %v360 = vadd.f32 %v358, %v342
  %v361 = vadd.f32 %v359, %v355
  %v362 = vtanh.pop %v360
  %v363 = vtanh.pop %v361
  %v364 = vmul.f32 %v362, 0.5
  %v365 = vmul.f32 %v363, 0.5
  %v366 = vadd.f32 %v364, 0.5
  %v367 = vadd.f32 %v365, 0.5
  %v368 = vmul.f32 %v366, %v314
  %v369 = vmul.f32 %v366, %v363
  %371 = vrot.lane.b32.xlu0 %v369, 64
  %v372 = vpop.permute.xlu0 %371
  %v374 = vadd.f32 %v368, %v372
  %v375 = vtanh.pop %v374
  %v376 = vmul.f32 %v367, %v375
  %v377 = vpack.c.bf16 %v376, %v376
  %379 = vrot.lane.b32.xlu0 %v376, 64
  %v380 = vpop.permute.xlu0 %379
  %382 = vst.msk [vmem:[#allocation3 + $0x8] sm:$0xff] %vm322, %v380
  %383 = vst.msk [vmem:[#allocation3 + $0x30] sm:$0xff] %vm324, %v380
  %385 = vrot.lane.b32.xlu0 %v377, 64
  %v386 = vpop.permute.xlu0 %385
  %v388 = vsel %vm268, %v386, 0
  %390 = vmatpush.bf16.msra.mxu0 0
  %391 = vmatpush.bf16.msra.mxu0 0
  %392 = vmatpush.bf16.msra.mxu0 0
  %393 = vmatpush.bf16.msra.mxu0 0
  %394 = vmatpush.bf16.msra.mxu0 %v258
  %395 = vmatpush.bf16.msra.mxu0 %v256
  %396 = vmatpush.bf16.msra.mxu0 %v254
  %397 = vmatpush.bf16.msra.mxu0 %v252
  %398 = vmatmul.bf16.gmra.mxu0 %v388
  %v399 = vpop.f32.mrf.mxu0
  %v400 = vadd.f32 0.0, %v399
  %v401 = vpop.f32.mrf.mxu0
  %402 = vdwg.mxu0
  %403 = vmatpush.bf16.msra.mxu0 0
  %404 = vmatpush.bf16.msra.mxu0 0
  %405 = vmatpush.bf16.msra.mxu0 0
  %406 = vmatpush.bf16.msra.mxu0 0
  %407 = vmatpush.bf16.msra.mxu0 %v259
  %408 = vmatpush.bf16.msra.mxu0 %v257
  %409 = vmatpush.bf16.msra.mxu0 %v255
  %410 = vmatpush.bf16.msra.mxu0 %v253
  %411 = vmatmul.bf16.gmra.mxu0 %v388
  %v412 = vpop.f32.mrf.mxu0
  %v413 = vadd.f32 0.0, %v412
  %v414 = vpop.f32.mrf.mxu0
  %415 = vdwg.mxu0
  %v416 = vld [vmem:[#allocation2 + $0x20] sm:$0xff]
  %v417 = vld [vmem:[#allocation2 + $0x28] sm:$0xff]
  %v418 = vadd.f32 %v416, %v400
  %v419 = vadd.f32 %v417, %v413
  %v420 = vtanh.pop %v418
  %v421 = vtanh.pop %v419
  %v422 = vmul.f32 %v420, 0.5
  %v423 = vmul.f32 %v421, 0.5
  %v424 = vadd.f32 %v422, 0.5
  %v425 = vadd.f32 %v423, 0.5
  %v426 = vmul.f32 %v424, %v374
  %v427 = vmul.f32 %v424, %v421
  %429 = vrot.lane.b32.xlu0 %v427, 64
  %v430 = vpop.permute.xlu0 %429
  %v432 = vadd.f32 %v426, %v430
  %v433 = vtanh.pop %v432
  %v434 = vmul.f32 %v425, %v433
  %v435 = vpack.c.bf16 %v434, %v434
  %437 = vrot.lane.b32.xlu0 %v434, 64
  %v438 = vpop.permute.xlu0 %437
  %440 = vst.msk [vmem:[#allocation3 + $0x10] sm:$0xff] %vm322, %v438
  %441 = vst.msk [vmem:[#allocation3 + $0x28] sm:$0xff] %vm324, %v438
  %443 = vrot.lane.b32.xlu0 %v435, 64
  %v444 = vpop.permute.xlu0 %443
  %v446 = vsel %vm268, %v444, 0
  %448 = vmatpush.bf16.msra.mxu0 0
  %449 = vmatpush.bf16.msra.mxu0 0
  %450 = vmatpush.bf16.msra.mxu0 0
  %451 = vmatpush.bf16.msra.mxu0 0
  %452 = vmatpush.bf16.msra.mxu0 %v258
  %453 = vmatpush.bf16.msra.mxu0 %v256
  %454 = vmatpush.bf16.msra.mxu0 %v254
  %455 = vmatpush.bf16.msra.mxu0 %v252
  %456 = vmatmul.bf16.gmra.mxu0 %v446
  %v457 = vpop.f32.mrf.mxu0
  %v458 = vadd.f32 0.0, %v457
  %v459 = vpop.f32.mrf.mxu0
  %460 = vdwg.mxu0
  %461 = vmatpush.bf16.msra.mxu0 0
  %462 = vmatpush.bf16.msra.mxu0 0
  %463 = vmatpush.bf16.msra.mxu0 0
  %464 = vmatpush.bf16.msra.mxu0 0
  %465 = vmatpush.bf16.msra.mxu0 %v259
  %466 = vmatpush.bf16.msra.mxu0 %v257
  %467 = vmatpush.bf16.msra.mxu0 %v255
  %468 = vmatpush.bf16.msra.mxu0 %v253
  %469 = vmatmul.bf16.gmra.mxu0 %v446
  %v470 = vpop.f32.mrf.mxu0
  %v471 = vadd.f32 0.0, %v470
  %v472 = vpop.f32.mrf.mxu0
  %473 = vdwg.mxu0
  %v474 = vld [vmem:[#allocation2 + $0x30] sm:$0xff]
  %v475 = vld [vmem:[#allocation2 + $0x38] sm:$0xff]
  %v476 = vadd.f32 %v474, %v458
  %v477 = vadd.f32 %v475, %v471
  %v478 = vtanh.pop %v476
  %v479 = vtanh.pop %v477
  %v480 = vmul.f32 %v478, 0.5
  %v481 = vmul.f32 %v479, 0.5
  %v482 = vadd.f32 %v480, 0.5
  %v483 = vadd.f32 %v481, 0.5
  %v484 = vmul.f32 %v482, %v432
  %v485 = vmul.f32 %v482, %v479
  %487 = vrot.lane.b32.xlu0 %v485, 64
  %v488 = vpop.permute.xlu0 %487
  %v490 = vadd.f32 %v484, %v488
  %v491 = vtanh.pop %v490
  %v492 = vmul.f32 %v483, %v491
  %v493 = vpack.c.bf16 %v492, %v492
  %495 = vrot.lane.b32.xlu0 %v492, 64
  %v496 = vpop.permute.xlu0 %495
  %498 = vst.msk [vmem:[#allocation3 + $0x18] sm:$0xff] %vm322, %v496
  %499 = vst.msk [vmem:[#allocation3 + $0x20] sm:$0xff] %vm324, %v496
  %501 = vrot.lane.b32.xlu0 %v493, 64
  %v502 = vpop.permute.xlu0 %501
  %v504 = vsel %vm268, %v502, 0
  %506 = vmatpush.bf16.msra.mxu0 0
  %507 = vmatpush.bf16.msra.mxu0 0
  %508 = vmatpush.bf16.msra.mxu0 0
  %509 = vmatpush.bf16.msra.mxu0 0
  %510 = vmatpush.bf16.msra.mxu0 %v258
  %511 = vmatpush.bf16.msra.mxu0 %v256
  %512 = vmatpush.bf16.msra.mxu0 %v254
  %513 = vmatpush.bf16.msra.mxu0 %v252
  %514 = vmatmul.bf16.gmra.mxu0 %v504
  %v515 = vpop.f32.mrf.mxu0
  %v516 = vadd.f32 0.0, %v515
  %v517 = vpop.f32.mrf.mxu0
  %518 = vdwg.mxu0
  %519 = vmatpush.bf16.msra.mxu0 0
  %520 = vmatpush.bf16.msra.mxu0 0
  %521 = vmatpush.bf16.msra.mxu0 0
  %522 = vmatpush.bf16.msra.mxu0 0
  %523 = vmatpush.bf16.msra.mxu0 %v259
  %524 = vmatpush.bf16.msra.mxu0 %v257
  %525 = vmatpush.bf16.msra.mxu0 %v255
  %526 = vmatpush.bf16.msra.mxu0 %v253
  %527 = vmatmul.bf16.gmra.mxu0 %v504
  %v528 = vpop.f32.mrf.mxu0
  %v529 = vadd.f32 0.0, %v528
  %v530 = vpop.f32.mrf.mxu0
  %531 = vdwg.mxu0
  %v532 = vld [vmem:[#allocation2 + $0x40] sm:$0xff]
  %v533 = vld [vmem:[#allocation2 + $0x48] sm:$0xff]
  %v534 = vadd.f32 %v532, %v516
  %v535 = vadd.f32 %v533, %v529
  %v536 = vtanh.pop %v534
  %v537 = vtanh.pop %v535
  %v538 = vmul.f32 %v536, 0.5
  %v539 = vmul.f32 %v537, 0.5
  %v540 = vadd.f32 %v538, 0.5
  %v541 = vadd.f32 %v539, 0.5
  %v542 = vmul.f32 %v540, %v490
  %v543 = vmul.f32 %v540, %v537
  %545 = vrot.lane.b32.xlu0 %v543, 64
  %v546 = vpop.permute.xlu0 %545
  %v548 = vadd.f32 %v542, %v546
  %v549 = vtanh.pop %v548
  %v550 = vmul.f32 %v541, %v549
  %v551 = vpack.c.bf16 %v550, %v550
  %553 = vrot.lane.b32.xlu0 %v550, 64
  %v554 = vpop.permute.xlu0 %553
  %556 = vst.msk [vmem:[#allocation3 + $0x20] sm:$0xff] %vm322, %v554
  %557 = vst.msk [vmem:[#allocation3 + $0x18] sm:$0xff] %vm324, %v554
  %559 = vrot.lane.b32.xlu0 %v551, 64
  %v560 = vpop.permute.xlu0 %559
  %v562 = vsel %vm268, %v560, 0
  %564 = vmatpush.bf16.msra.mxu0 0
  %565 = vmatpush.bf16.msra.mxu0 0
  %566 = vmatpush.bf16.msra.mxu0 0
  %567 = vmatpush.bf16.msra.mxu0 0
  %568 = vmatpush.bf16.msra.mxu0 %v258
  %569 = vmatpush.bf16.msra.mxu0 %v256
  %570 = vmatpush.bf16.msra.mxu0 %v254
  %571 = vmatpush.bf16.msra.mxu0 %v252
  %572 = vmatmul.bf16.gmra.mxu0 %v562
  %v573 = vpop.f32.mrf.mxu0
  %v574 = vadd.f32 0.0, %v573
  %v575 = vpop.f32.mrf.mxu0
  %576 = vdwg.mxu0
  %577 = vmatpush.bf16.msra.mxu0 0
  %578 = vmatpush.bf16.msra.mxu0 0
  %579 = vmatpush.bf16.msra.mxu0 0
  %580 = vmatpush.bf16.msra.mxu0 0
  %581 = vmatpush.bf16.msra.mxu0 %v259
  %582 = vmatpush.bf16.msra.mxu0 %v257
  %583 = vmatpush.bf16.msra.mxu0 %v255
  %584 = vmatpush.bf16.msra.mxu0 %v253
  %585 = vmatmul.bf16.gmra.mxu0 %v562
  %v586 = vpop.f32.mrf.mxu0
  %v587 = vadd.f32 0.0, %v586
  %v588 = vpop.f32.mrf.mxu0
  %589 = vdwg.mxu0
  %v590 = vld [vmem:[#allocation2 + $0x50] sm:$0xff]
  %v591 = vld [vmem:[#allocation2 + $0x58] sm:$0xff]
  %v592 = vadd.f32 %v590, %v574
  %v593 = vadd.f32 %v591, %v587
  %v594 = vtanh.pop %v592
  %v595 = vtanh.pop %v593
  %v596 = vmul.f32 %v594, 0.5
  %v597 = vmul.f32 %v595, 0.5
  %v598 = vadd.f32 %v596, 0.5
  %v599 = vadd.f32 %v597, 0.5
  %v600 = vmul.f32 %v598, %v548
  %v601 = vmul.f32 %v598, %v595
  %603 = vrot.lane.b32.xlu0 %v601, 64
  %v604 = vpop.permute.xlu0 %603
  %v606 = vadd.f32 %v600, %v604
  %v607 = vtanh.pop %v606
  %v608 = vmul.f32 %v599, %v607
  %v609 = vpack.c.bf16 %v608, %v608
  %611 = vrot.lane.b32.xlu0 %v608, 64
  %v612 = vpop.permute.xlu0 %611
  %614 = vst.msk [vmem:[#allocation3 + $0x28] sm:$0xff] %vm322, %v612
  %615 = vst.msk [vmem:[#allocation3 + $0x10] sm:$0xff] %vm324, %v612
  %617 = vrot.lane.b32.xlu0 %v609, 64
  %v618 = vpop.permute.xlu0 %617
  %v620 = vsel %vm268, %v618, 0
  %622 = vmatpush.bf16.msra.mxu0 0
  %623 = vmatpush.bf16.msra.mxu0 0
  %624 = vmatpush.bf16.msra.mxu0 0
  %625 = vmatpush.bf16.msra.mxu0 0
  %626 = vmatpush.bf16.msra.mxu0 %v258
  %627 = vmatpush.bf16.msra.mxu0 %v256
  %628 = vmatpush.bf16.msra.mxu0 %v254
  %629 = vmatpush.bf16.msra.mxu0 %v252
  %630 = vmatmul.bf16.gmra.mxu0 %v620
  %v631 = vpop.f32.mrf.mxu0
  %v632 = vadd.f32 0.0, %v631
  %v633 = vpop.f32.mrf.mxu0
  %634 = vdwg.mxu0
  %635 = vmatpush.bf16.msra.mxu0 0
  %636 = vmatpush.bf16.msra.mxu0 0
  %637 = vmatpush.bf16.msra.mxu0 0
  %638 = vmatpush.bf16.msra.mxu0 0
  %639 = vmatpush.bf16.msra.mxu0 %v259
  %640 = vmatpush.bf16.msra.mxu0 %v257
  %641 = vmatpush.bf16.msra.mxu0 %v255
  %642 = vmatpush.bf16.msra.mxu0 %v253
  %643 = vmatmul.bf16.gmra.mxu0 %v620
  %v644 = vpop.f32.mrf.mxu0
  %v645 = vadd.f32 0.0, %v644
  %v646 = vpop.f32.mrf.mxu0
  %647 = vdwg.mxu0
  %v648 = vld [vmem:[#allocation2 + $0x60] sm:$0xff]
  %v649 = vld [vmem:[#allocation2 + $0x68] sm:$0xff]
  %v650 = vadd.f32 %v648, %v632
  %v651 = vadd.f32 %v649, %v645
  %v652 = vtanh.pop %v650
  %v653 = vtanh.pop %v651
  %v654 = vmul.f32 %v652, 0.5
  %v655 = vmul.f32 %v653, 0.5
  %v656 = vadd.f32 %v654, 0.5
  %v657 = vadd.f32 %v655, 0.5
  %v658 = vmul.f32 %v656, %v606
  %v659 = vmul.f32 %v656, %v653
  %661 = vrot.lane.b32.xlu0 %v659, 64
  %v662 = vpop.permute.xlu0 %661
  %v664 = vadd.f32 %v658, %v662
  %v665 = vtanh.pop %v664
  %v666 = vmul.f32 %v657, %v665
  %v667 = vpack.c.bf16 %v666, %v666
  %669 = vrot.lane.b32.xlu0 %v666, 64
  %v670 = vpop.permute.xlu0 %669
  %672 = vst.msk [vmem:[#allocation3 + $0x30] sm:$0xff] %vm322, %v670
  %673 = vst.msk [vmem:[#allocation3 + $0x8] sm:$0xff] %vm324, %v670
  %675 = vrot.lane.b32.xlu0 %v667, 64
  %v676 = vpop.permute.xlu0 %675
  %v678 = vsel %vm268, %v676, 0
  %680 = vmatpush.bf16.msra.mxu0 0
  %681 = vmatpush.bf16.msra.mxu0 0
  %682 = vmatpush.bf16.msra.mxu0 0
  %683 = vmatpush.bf16.msra.mxu0 0
  %684 = vmatpush.bf16.msra.mxu0 %v258
  %685 = vmatpush.bf16.msra.mxu0 %v256
  %686 = vmatpush.bf16.msra.mxu0 %v254
  %687 = vmatpush.bf16.msra.mxu0 %v252
  %688 = vmatmul.bf16.gmra.mxu0 %v678
  %v689 = vpop.f32.mrf.mxu0
  %v690 = vadd.f32 0.0, %v689
  %v691 = vpop.f32.mrf.mxu0
  %692 = vdwg.mxu0
  %693 = vmatpush.bf16.msra.mxu0 0
  %694 = vmatpush.bf16.msra.mxu0 0
  %695 = vmatpush.bf16.msra.mxu0 0
  %696 = vmatpush.bf16.msra.mxu0 0
  %697 = vmatpush.bf16.msra.mxu0 %v259
  %698 = vmatpush.bf16.msra.mxu0 %v257
  %699 = vmatpush.bf16.msra.mxu0 %v255
  %700 = vmatpush.bf16.msra.mxu0 %v253
  %701 = vmatmul.bf16.gmra.mxu0 %v678
  %v702 = vpop.f32.mrf.mxu0
  %v703 = vadd.f32 0.0, %v702
  %v704 = vpop.f32.mrf.mxu0
  %705 = vdwg.mxu0
  %v706 = vld [vmem:[#allocation2 + $0x70] sm:$0xff]
  %v707 = vld [vmem:[#allocation2 + $0x78] sm:$0xff]
  %v708 = vadd.f32 %v706, %v690
  %v709 = vadd.f32 %v707, %v703
  %v710 = vtanh.pop %v708
  %v711 = vtanh.pop %v709
  %v712 = vmul.f32 %v710, 0.5
  %v713 = vmul.f32 %v711, 0.5
  %v714 = vadd.f32 %v712, 0.5
  %v715 = vadd.f32 %v713, 0.5
  %v716 = vmul.f32 %v714, %v664
  %v717 = vmul.f32 %v714, %v711
  %719 = vrot.lane.b32.xlu0 %v717, 64
  %v720 = vpop.permute.xlu0 %719
  %v722 = vadd.f32 %v716, %v720
  %v723 = vtanh.pop %v722
  %v724 = vmul.f32 %v715, %v723
  %726 = vrot.lane.b32.xlu0 %v724, 64
  %v727 = vpop.permute.xlu0 %726
  %729 = vst.msk [vmem:[#allocation3 + $0x38] sm:$0xff] %vm322, %v727
  %730 = vst.msk [vmem:[#allocation3] sm:$0xff] %vm324, %v727
  %v731 = vld [vmem:[#allocation3] sm:$0xff]
  %v732 = vld [vmem:[#allocation3 + $0x8] sm:$0xff]
  %v733 = vld [vmem:[#allocation3 + $0x10] sm:$0xff]
  %v734 = vld [vmem:[#allocation3 + $0x18] sm:$0xff]
  %v735 = vld [vmem:[#allocation3 + $0x20] sm:$0xff]
  %v736 = vld [vmem:[#allocation3 + $0x28] sm:$0xff]
  %v737 = vld [vmem:[#allocation3 + $0x30] sm:$0xff]
  %v738 = vld [vmem:[#allocation3 + $0x38] sm:$0xff]
  %v739 = vpack.c.bf16 %v732, %v731
  %v740 = vpack.c.bf16 %v734, %v733
  %v741 = vpack.c.bf16 %v736, %v735
  %v742 = vpack.c.bf16 %v738, %v737
  %v743 = vld [vmem:[%s4] sm:$0xff]
  %v744 = vld [vmem:[%s4 + $0x8] sm:$0xff]
  %v745 = vld [vmem:[%s4 + $0x10] sm:$0xff]
  %v746 = vld [vmem:[%s4 + $0x18] sm:$0xff]
  %v747 = vld [vmem:[%s4 + $0x20] sm:$0xff]
  %v748 = vld [vmem:[%s4 + $0x28] sm:$0xff]
  %v749 = vld [vmem:[%s4 + $0x30] sm:$0xff]
  %v750 = vld [vmem:[%s4 + $0x38] sm:$0xff]
  %v751 = vld [vmem:[%s6] sm:$0x3]
  %v753 = vperm.slane %v751, 0
  %v754 = vperm.slane %v751, 1
  %v765 = vunpack.c.l.b16 %v743
  %v766 = vunpack.c.h.b16 %v743
  %v767 = vunpack.c.l.b16 %v744
  %v768 = vunpack.c.h.b16 %v744
  %v769 = vunpack.c.l.b16 %v745
  %v770 = vunpack.c.h.b16 %v745
  %v771 = vunpack.c.l.b16 %v746
  %v772 = vunpack.c.h.b16 %v746
  %v773 = vunpack.c.l.b16 %v747
  %v774 = vunpack.c.h.b16 %v747
  %v775 = vunpack.c.l.b16 %v748
  %v776 = vunpack.c.h.b16 %v748
  %v777 = vunpack.c.l.b16 %v749
  %v778 = vunpack.c.h.b16 %v749
  %v779 = vunpack.c.l.b16 %v750
  %v780 = vunpack.c.h.b16 %v750
  %v781 = vpack.c.b16 %v767, %v765
  %v782 = vpack.c.b16 %v768, %v766
  %v783 = vpack.c.b16 %v771, %v769
  %v784 = vpack.c.b16 %v772, %v770
  %v785 = vpack.c.b16 %v775, %v773
  %v786 = vpack.c.b16 %v776, %v774
  %v787 = vpack.c.b16 %v779, %v777
  %v788 = vpack.c.b16 %v780, %v778
  %v798 = vsel %vm268, %v739, 0
  %v801 = vsel %vm268, %v740, 0
  %v804 = vsel %vm268, %v741, 0
  %v807 = vsel %vm268, %v742, 0
  %809 = vmatpush.bf16.msra.mxu0 0
  %810 = vmatpush.bf16.msra.mxu0 0
  %811 = vmatpush.bf16.msra.mxu0 0
  %812 = vmatpush.bf16.msra.mxu0 0
  %813 = vmatpush.bf16.msra.mxu0 %v787
  %814 = vmatpush.bf16.msra.mxu0 %v785
  %815 = vmatpush.bf16.msra.mxu0 %v783
  %816 = vmatpush.bf16.msra.mxu0 %v781
  %817 = vmatmul.bf16.gmra.mxu0 %v798
  %v818 = vpop.f32.mrf.mxu0
  %v819 = vadd.f32 %v753, %v818
  %v820 = vpop.f32.mrf.mxu0
  %v821 = vadd.f32 %v753, %v820
  %822 = vmatmul.bf16.gmra.mxu0 %v801
  %v823 = vpop.f32.mrf.mxu0
  %v824 = vadd.f32 %v753, %v823
  %v825 = vpop.f32.mrf.mxu0
  %v826 = vadd.f32 %v753, %v825
  %827 = vmatmul.bf16.gmra.mxu0 %v804
  %v828 = vpop.f32.mrf.mxu0
  %v829 = vadd.f32 %v753, %v828
  %v830 = vpop.f32.mrf.mxu0
  %v831 = vadd.f32 %v753, %v830
  %832 = vmatmul.bf16.gmra.mxu0 %v807
  %v833 = vpop.f32.mrf.mxu0
  %v834 = vadd.f32 %v753, %v833
  %v835 = vpop.f32.mrf.mxu0
  %v836 = vadd.f32 %v753, %v835
  %837 = vdwg.mxu0
  %838 = vmatpush.bf16.msra.mxu0 0
  %839 = vmatpush.bf16.msra.mxu0 0
  %840 = vmatpush.bf16.msra.mxu0 0
  %841 = vmatpush.bf16.msra.mxu0 0
  %842 = vmatpush.bf16.msra.mxu0 %v788
  %843 = vmatpush.bf16.msra.mxu0 %v786
  %844 = vmatpush.bf16.msra.mxu0 %v784
  %845 = vmatpush.bf16.msra.mxu0 %v782
  %846 = vmatmul.bf16.gmra.mxu0 %v798
  %v847 = vpop.f32.mrf.mxu0
  %v848 = vadd.f32 %v754, %v847
  %v849 = vpop.f32.mrf.mxu0
  %v850 = vadd.f32 %v754, %v849
  %851 = vmatmul.bf16.gmra.mxu0 %v801
  %v852 = vpop.f32.mrf.mxu0
  %v853 = vadd.f32 %v754, %v852
  %v854 = vpop.f32.mrf.mxu0
  %v855 = vadd.f32 %v754, %v854
  %856 = vmatmul.bf16.gmra.mxu0 %v804
  %v857 = vpop.f32.mrf.mxu0
  %v858 = vadd.f32 %v754, %v857
  %v859 = vpop.f32.mrf.mxu0
  %v860 = vadd.f32 %v754, %v859
  %861 = vmatmul.bf16.gmra.mxu0 %v807
  %v862 = vpop.f32.mrf.mxu0
  %v863 = vadd.f32 %v754, %v862
  %v864 = vpop.f32.mrf.mxu0
  %v865 = vadd.f32 %v754, %v864
  %866 = vdwg.mxu0
  %v867 = vmul.f32 %v819, %v147
  %v868 = vmul.f32 %v848, %v148
  %v869 = vmul.f32 %v836, %v154
  %v870 = vmul.f32 %v865, %v155
  %v871 = vadd.f32 %v867, %v869
  %v872 = vadd.f32 %v868, %v870
  %873 = vst [vmem:[#allocation2] sm:$0xff] %v871
  %874 = vst [vmem:[#allocation2 + $0x8] sm:$0xff] %v872
  %v875 = vmul.f32 %v821, %v147
  %v876 = vmul.f32 %v850, %v148
  %v877 = vmul.f32 %v834, %v154
  %v878 = vmul.f32 %v863, %v155
  %v879 = vadd.f32 %v875, %v877
  %v880 = vadd.f32 %v876, %v878
  %881 = vst [vmem:[#allocation2 + $0x10] sm:$0xff] %v879
  %882 = vst [vmem:[#allocation2 + $0x18] sm:$0xff] %v880
  %v883 = vmul.f32 %v824, %v147
  %v884 = vmul.f32 %v853, %v148
  %v885 = vmul.f32 %v831, %v154
  %v886 = vmul.f32 %v860, %v155
  %v887 = vadd.f32 %v883, %v885
  %v888 = vadd.f32 %v884, %v886
  %889 = vst [vmem:[#allocation2 + $0x20] sm:$0xff] %v887
  %890 = vst [vmem:[#allocation2 + $0x28] sm:$0xff] %v888
  %v891 = vmul.f32 %v826, %v147
  %v892 = vmul.f32 %v855, %v148
  %v893 = vmul.f32 %v829, %v154
  %v894 = vmul.f32 %v858, %v155
  %v895 = vadd.f32 %v891, %v893
  %v896 = vadd.f32 %v892, %v894
  %897 = vst [vmem:[#allocation2 + $0x30] sm:$0xff] %v895
  %898 = vst [vmem:[#allocation2 + $0x38] sm:$0xff] %v896
  %v899 = vmul.f32 %v829, %v147
  %v900 = vmul.f32 %v858, %v148
  %v901 = vmul.f32 %v826, %v154
  %v902 = vmul.f32 %v855, %v155
  %v903 = vadd.f32 %v899, %v901
  %v904 = vadd.f32 %v900, %v902
  %905 = vst [vmem:[#allocation2 + $0x40] sm:$0xff] %v903
  %906 = vst [vmem:[#allocation2 + $0x48] sm:$0xff] %v904
  %v907 = vmul.f32 %v831, %v147
  %v908 = vmul.f32 %v860, %v148
  %v909 = vmul.f32 %v824, %v154
  %v910 = vmul.f32 %v853, %v155
  %v911 = vadd.f32 %v907, %v909
  %v912 = vadd.f32 %v908, %v910
  %913 = vst [vmem:[#allocation2 + $0x50] sm:$0xff] %v911
  %914 = vst [vmem:[#allocation2 + $0x58] sm:$0xff] %v912
  %v915 = vmul.f32 %v834, %v147
  %v916 = vmul.f32 %v863, %v148
  %v917 = vmul.f32 %v821, %v154
  %v918 = vmul.f32 %v850, %v155
  %v919 = vadd.f32 %v915, %v917
  %v920 = vadd.f32 %v916, %v918
  %921 = vst [vmem:[#allocation2 + $0x60] sm:$0xff] %v919
  %922 = vst [vmem:[#allocation2 + $0x68] sm:$0xff] %v920
  %v923 = vmul.f32 %v836, %v147
  %v924 = vmul.f32 %v865, %v148
  %v925 = vmul.f32 %v819, %v154
  %v926 = vmul.f32 %v848, %v155
  %v927 = vadd.f32 %v923, %v925
  %v928 = vadd.f32 %v924, %v926
  %929 = vst [vmem:[#allocation2 + $0x70] sm:$0xff] %v927
  %930 = vst [vmem:[#allocation2 + $0x78] sm:$0xff] %v928
  %v931 = vld [vmem:[%s5] sm:$0xff]
  %v932 = vld [vmem:[%s5 + $0x8] sm:$0xff]
  %v933 = vld [vmem:[%s5 + $0x10] sm:$0xff]
  %v934 = vld [vmem:[%s5 + $0x18] sm:$0xff]
  %v935 = vld [vmem:[%s5 + $0x20] sm:$0xff]
  %v936 = vld [vmem:[%s5 + $0x28] sm:$0xff]
  %v937 = vld [vmem:[%s5 + $0x30] sm:$0xff]
  %v938 = vld [vmem:[%s5 + $0x38] sm:$0xff]
  %v947 = vunpack.c.l.b16 %v931
  %v948 = vunpack.c.h.b16 %v931
  %v949 = vunpack.c.l.b16 %v932
  %v950 = vunpack.c.h.b16 %v932
  %v951 = vunpack.c.l.b16 %v933
  %v952 = vunpack.c.h.b16 %v933
  %v953 = vunpack.c.l.b16 %v934
  %v954 = vunpack.c.h.b16 %v934
  %v955 = vunpack.c.l.b16 %v935
  %v956 = vunpack.c.h.b16 %v935
  %v957 = vunpack.c.l.b16 %v936
  %v958 = vunpack.c.h.b16 %v936
  %v959 = vunpack.c.l.b16 %v937
  %v960 = vunpack.c.h.b16 %v937
  %v961 = vunpack.c.l.b16 %v938
  %v962 = vunpack.c.h.b16 %v938
  %v963 = vpack.c.b16 %v949, %v947
  %v964 = vpack.c.b16 %v950, %v948
  %v965 = vpack.c.b16 %v953, %v951
  %v966 = vpack.c.b16 %v954, %v952
  %v967 = vpack.c.b16 %v957, %v955
  %v968 = vpack.c.b16 %v958, %v956
  %v969 = vpack.c.b16 %v961, %v959
  %v970 = vpack.c.b16 %v962, %v960
  %979 = vmatpush.bf16.msra.mxu0 0
  %980 = vmatpush.bf16.msra.mxu0 0
  %981 = vmatpush.bf16.msra.mxu0 0
  %982 = vmatpush.bf16.msra.mxu0 0
  %983 = vmatpush.bf16.msra.mxu0 %v969
  %984 = vmatpush.bf16.msra.mxu0 %v967
  %985 = vmatpush.bf16.msra.mxu0 %v965
  %986 = vmatpush.bf16.msra.mxu0 %v963
  %987 = vmatmul.bf16.gmra.mxu0 %v270
  %v988 = vpop.f32.mrf.mxu0
  %v989 = vadd.f32 0.0, %v988
  %v990 = vpop.f32.mrf.mxu0
  %991 = vdwg.mxu0
  %992 = vmatpush.bf16.msra.mxu0 0
  %993 = vmatpush.bf16.msra.mxu0 0
  %994 = vmatpush.bf16.msra.mxu0 0
  %995 = vmatpush.bf16.msra.mxu0 0
  %996 = vmatpush.bf16.msra.mxu0 %v970
  %997 = vmatpush.bf16.msra.mxu0 %v968
  %998 = vmatpush.bf16.msra.mxu0 %v966
  %999 = vmatpush.bf16.msra.mxu0 %v964
  %1000 = vmatmul.bf16.gmra.mxu0 %v270
  %v1001 = vpop.f32.mrf.mxu0
  %v1002 = vadd.f32 0.0, %v1001
  %v1003 = vpop.f32.mrf.mxu0
  %1004 = vdwg.mxu0
  %v1005 = vld [vmem:[#allocation2] sm:$0xff]
  %v1006 = vld [vmem:[#allocation2 + $0x8] sm:$0xff]
  %v1007 = vadd.f32 %v1005, %v989
  %v1008 = vadd.f32 %v1006, %v1002
  %v1009 = vtanh.pop %v1007
  %v1010 = vtanh.pop %v1008
  %v1011 = vmul.f32 %v1009, 0.5
  %v1012 = vmul.f32 %v1010, 0.5
  %v1013 = vadd.f32 %v1011, 0.5
  %v1014 = vadd.f32 %v1012, 0.5
  %v1015 = vmul.f32 %v1013, 0.0
  %v1016 = vmul.f32 %v1013, %v1010
  %1018 = vrot.lane.b32.xlu0 %v1016, 64
  %v1019 = vpop.permute.xlu0 %1018
  %v1021 = vadd.f32 %v1015, %v1019
  %v1022 = vtanh.pop %v1021
  %v1023 = vmul.f32 %v1014, %v1022
  %v1024 = vpack.c.bf16 %v1023, %v1023
  %vm1025 = vcmask 785920
  %1026 = vst.msk [vmem:[#allocation3] sm:$0xff] %vm1025, %v1023
  %vm1027 = vcmask 1048320
  %1028 = vst.msk [vmem:[#allocation3 + $0x38] sm:$0xff] %vm1027, %v1023
  %1030 = vrot.lane.b32.xlu0 %v1024, 64
  %v1031 = vpop.permute.xlu0 %1030
  %v1033 = vsel %vm268, %v1031, 0
  %1035 = vmatpush.bf16.msra.mxu0 0
  %1036 = vmatpush.bf16.msra.mxu0 0
  %1037 = vmatpush.bf16.msra.mxu0 0
  %1038 = vmatpush.bf16.msra.mxu0 0
  %1039 = vmatpush.bf16.msra.mxu0 %v969
  %1040 = vmatpush.bf16.msra.mxu0 %v967
  %1041 = vmatpush.bf16.msra.mxu0 %v965
  %1042 = vmatpush.bf16.msra.mxu0 %v963
  %1043 = vmatmul.bf16.gmra.mxu0 %v1033
  %v1044 = vpop.f32.mrf.mxu0
  %v1045 = vadd.f32 0.0, %v1044
  %v1046 = vpop.f32.mrf.mxu0
  %1047 = vdwg.mxu0
  %1048 = vmatpush.bf16.msra.mxu0 0
  %1049 = vmatpush.bf16.msra.mxu0 0
  %1050 = vmatpush.bf16.msra.mxu0 0
  %1051 = vmatpush.bf16.msra.mxu0 0
  %1052 = vmatpush.bf16.msra.mxu0 %v970
  %1053 = vmatpush.bf16.msra.mxu0 %v968
  %1054 = vmatpush.bf16.msra.mxu0 %v966
  %1055 = vmatpush.bf16.msra.mxu0 %v964
  %1056 = vmatmul.bf16.gmra.mxu0 %v1033
  %v1057 = vpop.f32.mrf.mxu0
  %v1058 = vadd.f32 0.0, %v1057
  %v1059 = vpop.f32.mrf.mxu0
  %1060 = vdwg.mxu0
  %v1061 = vld [vmem:[#allocation2 + $0x10] sm:$0xff]
  %v1062 = vld [vmem:[#allocation2 + $0x18] sm:$0xff]
  %v1063 = vadd.f32 %v1061, %v1045
  %v1064 = vadd.f32 %v1062, %v1058
  %v1065 = vtanh.pop %v1063
  %v1066 = vtanh.pop %v1064
  %v1067 = vmul.f32 %v1065, 0.5
  %v1068 = vmul.f32 %v1066, 0.5
  %v1069 = vadd.f32 %v1067, 0.5
  %v1070 = vadd.f32 %v1068, 0.5
  %v1071 = vmul.f32 %v1069, %v1021
  %v1072 = vmul.f32 %v1069, %v1066
  %1074 = vrot.lane.b32.xlu0 %v1072, 64
  %v1075 = vpop.permute.xlu0 %1074
  %v1077 = vadd.f32 %v1071, %v1075
  %v1078 = vtanh.pop %v1077
  %v1079 = vmul.f32 %v1070, %v1078
  %v1080 = vpack.c.bf16 %v1079, %v1079
  %1081 = vst.msk [vmem:[#allocation3 + $0x8] sm:$0xff] %vm1025, %v1079
  %1082 = vst.msk [vmem:[#allocation3 + $0x30] sm:$0xff] %vm1027, %v1079
  %1084 = vrot.lane.b32.xlu0 %v1080, 64
  %v1085 = vpop.permute.xlu0 %1084
  %v1087 = vsel %vm268, %v1085, 0
  %1089 = vmatpush.bf16.msra.mxu0 0
  %1090 = vmatpush.bf16.msra.mxu0 0
  %1091 = vmatpush.bf16.msra.mxu0 0
  %1092 = vmatpush.bf16.msra.mxu0 0
  %1093 = vmatpush.bf16.msra.mxu0 %v969
  %1094 = vmatpush.bf16.msra.mxu0 %v967
  %1095 = vmatpush.bf16.msra.mxu0 %v965
  %1096 = vmatpush.bf16.msra.mxu0 %v963
  %1097 = vmatmul.bf16.gmra.mxu0 %v1087
  %v1098 = vpop.f32.mrf.mxu0
  %v1099 = vadd.f32 0.0, %v1098
  %v1100 = vpop.f32.mrf.mxu0
  %1101 = vdwg.mxu0
  %1102 = vmatpush.bf16.msra.mxu0 0
  %1103 = vmatpush.bf16.msra.mxu0 0
  %1104 = vmatpush.bf16.msra.mxu0 0
  %1105 = vmatpush.bf16.msra.mxu0 0
  %1106 = vmatpush.bf16.msra.mxu0 %v970
  %1107 = vmatpush.bf16.msra.mxu0 %v968
  %1108 = vmatpush.bf16.msra.mxu0 %v966
  %1109 = vmatpush.bf16.msra.mxu0 %v964
  %1110 = vmatmul.bf16.gmra.mxu0 %v1087
  %v1111 = vpop.f32.mrf.mxu0
  %v1112 = vadd.f32 0.0, %v1111
  %v1113 = vpop.f32.mrf.mxu0
  %1114 = vdwg.mxu0
  %v1115 = vld [vmem:[#allocation2 + $0x20] sm:$0xff]
  %v1116 = vld [vmem:[#allocation2 + $0x28] sm:$0xff]
  %v1117 = vadd.f32 %v1115, %v1099
  %v1118 = vadd.f32 %v1116, %v1112
  %v1119 = vtanh.pop %v1117
  %v1120 = vtanh.pop %v1118
  %v1121 = vmul.f32 %v1119, 0.5
  %v1122 = vmul.f32 %v1120, 0.5
  %v1123 = vadd.f32 %v1121, 0.5
  %v1124 = vadd.f32 %v1122, 0.5
  %v1125 = vmul.f32 %v1123, %v1077
  %v1126 = vmul.f32 %v1123, %v1120
  %1128 = vrot.lane.b32.xlu0 %v1126, 64
  %v1129 = vpop.permute.xlu0 %1128
  %v1131 = vadd.f32 %v1125, %v1129
  %v1132 = vtanh.pop %v1131
  %v1133 = vmul.f32 %v1124, %v1132
  %v1134 = vpack.c.bf16 %v1133, %v1133
  %1135 = vst.msk [vmem:[#allocation3 + $0x10] sm:$0xff] %vm1025, %v1133
  %1136 = vst.msk [vmem:[#allocation3 + $0x28] sm:$0xff] %vm1027, %v1133
  %1138 = vrot.lane.b32.xlu0 %v1134, 64
  %v1139 = vpop.permute.xlu0 %1138
  %v1141 = vsel %vm268, %v1139, 0
  %1143 = vmatpush.bf16.msra.mxu0 0
  %1144 = vmatpush.bf16.msra.mxu0 0
  %1145 = vmatpush.bf16.msra.mxu0 0
  %1146 = vmatpush.bf16.msra.mxu0 0
  %1147 = vmatpush.bf16.msra.mxu0 %v969
  %1148 = vmatpush.bf16.msra.mxu0 %v967
  %1149 = vmatpush.bf16.msra.mxu0 %v965
  %1150 = vmatpush.bf16.msra.mxu0 %v963
  %1151 = vmatmul.bf16.gmra.mxu0 %v1141
  %v1152 = vpop.f32.mrf.mxu0
  %v1153 = vadd.f32 0.0, %v1152
  %v1154 = vpop.f32.mrf.mxu0
  %1155 = vdwg.mxu0
  %1156 = vmatpush.bf16.msra.mxu0 0
  %1157 = vmatpush.bf16.msra.mxu0 0
  %1158 = vmatpush.bf16.msra.mxu0 0
  %1159 = vmatpush.bf16.msra.mxu0 0
  %1160 = vmatpush.bf16.msra.mxu0 %v970
  %1161 = vmatpush.bf16.msra.mxu0 %v968
  %1162 = vmatpush.bf16.msra.mxu0 %v966
  %1163 = vmatpush.bf16.msra.mxu0 %v964
  %1164 = vmatmul.bf16.gmra.mxu0 %v1141
  %v1165 = vpop.f32.mrf.mxu0
  %v1166 = vadd.f32 0.0, %v1165
  %v1167 = vpop.f32.mrf.mxu0
  %1168 = vdwg.mxu0
  %v1169 = vld [vmem:[#allocation2 + $0x30] sm:$0xff]
  %v1170 = vld [vmem:[#allocation2 + $0x38] sm:$0xff]
  %v1171 = vadd.f32 %v1169, %v1153
  %v1172 = vadd.f32 %v1170, %v1166
  %v1173 = vtanh.pop %v1171
  %v1174 = vtanh.pop %v1172
  %v1175 = vmul.f32 %v1173, 0.5
  %v1176 = vmul.f32 %v1174, 0.5
  %v1177 = vadd.f32 %v1175, 0.5
  %v1178 = vadd.f32 %v1176, 0.5
  %v1179 = vmul.f32 %v1177, %v1131
  %v1180 = vmul.f32 %v1177, %v1174
  %1182 = vrot.lane.b32.xlu0 %v1180, 64
  %v1183 = vpop.permute.xlu0 %1182
  %v1185 = vadd.f32 %v1179, %v1183
  %v1186 = vtanh.pop %v1185
  %v1187 = vmul.f32 %v1178, %v1186
  %v1188 = vpack.c.bf16 %v1187, %v1187
  %1189 = vst.msk [vmem:[#allocation3 + $0x18] sm:$0xff] %vm1025, %v1187
  %1190 = vst.msk [vmem:[#allocation3 + $0x20] sm:$0xff] %vm1027, %v1187
  %1192 = vrot.lane.b32.xlu0 %v1188, 64
  %v1193 = vpop.permute.xlu0 %1192
  %v1195 = vsel %vm268, %v1193, 0
  %1197 = vmatpush.bf16.msra.mxu0 0
  %1198 = vmatpush.bf16.msra.mxu0 0
  %1199 = vmatpush.bf16.msra.mxu0 0
  %1200 = vmatpush.bf16.msra.mxu0 0
  %1201 = vmatpush.bf16.msra.mxu0 %v969
  %1202 = vmatpush.bf16.msra.mxu0 %v967
  %1203 = vmatpush.bf16.msra.mxu0 %v965
  %1204 = vmatpush.bf16.msra.mxu0 %v963
  %1205 = vmatmul.bf16.gmra.mxu0 %v1195
  %v1206 = vpop.f32.mrf.mxu0
  %v1207 = vadd.f32 0.0, %v1206
  %v1208 = vpop.f32.mrf.mxu0
  %1209 = vdwg.mxu0
  %1210 = vmatpush.bf16.msra.mxu0 0
  %1211 = vmatpush.bf16.msra.mxu0 0
  %1212 = vmatpush.bf16.msra.mxu0 0
  %1213 = vmatpush.bf16.msra.mxu0 0
  %1214 = vmatpush.bf16.msra.mxu0 %v970
  %1215 = vmatpush.bf16.msra.mxu0 %v968
  %1216 = vmatpush.bf16.msra.mxu0 %v966
  %1217 = vmatpush.bf16.msra.mxu0 %v964
  %1218 = vmatmul.bf16.gmra.mxu0 %v1195
  %v1219 = vpop.f32.mrf.mxu0
  %v1220 = vadd.f32 0.0, %v1219
  %v1221 = vpop.f32.mrf.mxu0
  %1222 = vdwg.mxu0
  %v1223 = vld [vmem:[#allocation2 + $0x40] sm:$0xff]
  %v1224 = vld [vmem:[#allocation2 + $0x48] sm:$0xff]
  %v1225 = vadd.f32 %v1223, %v1207
  %v1226 = vadd.f32 %v1224, %v1220
  %v1227 = vtanh.pop %v1225
  %v1228 = vtanh.pop %v1226
  %v1229 = vmul.f32 %v1227, 0.5
  %v1230 = vmul.f32 %v1228, 0.5
  %v1231 = vadd.f32 %v1229, 0.5
  %v1232 = vadd.f32 %v1230, 0.5
  %v1233 = vmul.f32 %v1231, %v1185
  %v1234 = vmul.f32 %v1231, %v1228
  %1236 = vrot.lane.b32.xlu0 %v1234, 64
  %v1237 = vpop.permute.xlu0 %1236
  %v1239 = vadd.f32 %v1233, %v1237
  %v1240 = vtanh.pop %v1239
  %v1241 = vmul.f32 %v1232, %v1240
  %v1242 = vpack.c.bf16 %v1241, %v1241
  %1243 = vst.msk [vmem:[#allocation3 + $0x20] sm:$0xff] %vm1025, %v1241
  %1244 = vst.msk [vmem:[#allocation3 + $0x18] sm:$0xff] %vm1027, %v1241
  %1246 = vrot.lane.b32.xlu0 %v1242, 64
  %v1247 = vpop.permute.xlu0 %1246
  %v1249 = vsel %vm268, %v1247, 0
  %1251 = vmatpush.bf16.msra.mxu0 0
  %1252 = vmatpush.bf16.msra.mxu0 0
  %1253 = vmatpush.bf16.msra.mxu0 0
  %1254 = vmatpush.bf16.msra.mxu0 0
  %1255 = vmatpush.bf16.msra.mxu0 %v969
  %1256 = vmatpush.bf16.msra.mxu0 %v967
  %1257 = vmatpush.bf16.msra.mxu0 %v965
  %1258 = vmatpush.bf16.msra.mxu0 %v963
  %1259 = vmatmul.bf16.gmra.mxu0 %v1249
  %v1260 = vpop.f32.mrf.mxu0
  %v1261 = vadd.f32 0.0, %v1260
  %v1262 = vpop.f32.mrf.mxu0
  %1263 = vdwg.mxu0
  %1264 = vmatpush.bf16.msra.mxu0 0
  %1265 = vmatpush.bf16.msra.mxu0 0
  %1266 = vmatpush.bf16.msra.mxu0 0
  %1267 = vmatpush.bf16.msra.mxu0 0
  %1268 = vmatpush.bf16.msra.mxu0 %v970
  %1269 = vmatpush.bf16.msra.mxu0 %v968
  %1270 = vmatpush.bf16.msra.mxu0 %v966
  %1271 = vmatpush.bf16.msra.mxu0 %v964
  %1272 = vmatmul.bf16.gmra.mxu0 %v1249
  %v1273 = vpop.f32.mrf.mxu0
  %v1274 = vadd.f32 0.0, %v1273
  %v1275 = vpop.f32.mrf.mxu0
  %1276 = vdwg.mxu0
  %v1277 = vld [vmem:[#allocation2 + $0x50] sm:$0xff]
  %v1278 = vld [vmem:[#allocation2 + $0x58] sm:$0xff]
  %v1279 = vadd.f32 %v1277, %v1261
  %v1280 = vadd.f32 %v1278, %v1274
  %v1281 = vtanh.pop %v1279
  %v1282 = vtanh.pop %v1280
  %v1283 = vmul.f32 %v1281, 0.5
  %v1284 = vmul.f32 %v1282, 0.5
  %v1285 = vadd.f32 %v1283, 0.5
  %v1286 = vadd.f32 %v1284, 0.5
  %v1287 = vmul.f32 %v1285, %v1239
  %v1288 = vmul.f32 %v1285, %v1282
  %1290 = vrot.lane.b32.xlu0 %v1288, 64
  %v1291 = vpop.permute.xlu0 %1290
  %v1293 = vadd.f32 %v1287, %v1291
  %v1294 = vtanh.pop %v1293
  %v1295 = vmul.f32 %v1286, %v1294
  %v1296 = vpack.c.bf16 %v1295, %v1295
  %1297 = vst.msk [vmem:[#allocation3 + $0x28] sm:$0xff] %vm1025, %v1295
  %1298 = vst.msk [vmem:[#allocation3 + $0x10] sm:$0xff] %vm1027, %v1295
  %1300 = vrot.lane.b32.xlu0 %v1296, 64
  %v1301 = vpop.permute.xlu0 %1300
  %v1303 = vsel %vm268, %v1301, 0
  %1305 = vmatpush.bf16.msra.mxu0 0
  %1306 = vmatpush.bf16.msra.mxu0 0
  %1307 = vmatpush.bf16.msra.mxu0 0
  %1308 = vmatpush.bf16.msra.mxu0 0
  %1309 = vmatpush.bf16.msra.mxu0 %v969
  %1310 = vmatpush.bf16.msra.mxu0 %v967
  %1311 = vmatpush.bf16.msra.mxu0 %v965
  %1312 = vmatpush.bf16.msra.mxu0 %v963
  %1313 = vmatmul.bf16.gmra.mxu0 %v1303
  %v1314 = vpop.f32.mrf.mxu0
  %v1315 = vadd.f32 0.0, %v1314
  %v1316 = vpop.f32.mrf.mxu0
  %1317 = vdwg.mxu0
  %1318 = vmatpush.bf16.msra.mxu0 0
  %1319 = vmatpush.bf16.msra.mxu0 0
  %1320 = vmatpush.bf16.msra.mxu0 0
  %1321 = vmatpush.bf16.msra.mxu0 0
  %1322 = vmatpush.bf16.msra.mxu0 %v970
  %1323 = vmatpush.bf16.msra.mxu0 %v968
  %1324 = vmatpush.bf16.msra.mxu0 %v966
  %1325 = vmatpush.bf16.msra.mxu0 %v964
  %1326 = vmatmul.bf16.gmra.mxu0 %v1303
  %v1327 = vpop.f32.mrf.mxu0
  %v1328 = vadd.f32 0.0, %v1327
  %v1329 = vpop.f32.mrf.mxu0
  %1330 = vdwg.mxu0
  %v1331 = vld [vmem:[#allocation2 + $0x60] sm:$0xff]
  %v1332 = vld [vmem:[#allocation2 + $0x68] sm:$0xff]
  %v1333 = vadd.f32 %v1331, %v1315
  %v1334 = vadd.f32 %v1332, %v1328
  %v1335 = vtanh.pop %v1333
  %v1336 = vtanh.pop %v1334
  %v1337 = vmul.f32 %v1335, 0.5
  %v1338 = vmul.f32 %v1336, 0.5
  %v1339 = vadd.f32 %v1337, 0.5
  %v1340 = vadd.f32 %v1338, 0.5
  %v1341 = vmul.f32 %v1339, %v1293
  %v1342 = vmul.f32 %v1339, %v1336
  %1344 = vrot.lane.b32.xlu0 %v1342, 64
  %v1345 = vpop.permute.xlu0 %1344
  %v1347 = vadd.f32 %v1341, %v1345
  %v1348 = vtanh.pop %v1347
  %v1349 = vmul.f32 %v1340, %v1348
  %v1350 = vpack.c.bf16 %v1349, %v1349
  %1351 = vst.msk [vmem:[#allocation3 + $0x30] sm:$0xff] %vm1025, %v1349
  %1352 = vst.msk [vmem:[#allocation3 + $0x8] sm:$0xff] %vm1027, %v1349
  %1354 = vrot.lane.b32.xlu0 %v1350, 64
  %v1355 = vpop.permute.xlu0 %1354
  %v1357 = vsel %vm268, %v1355, 0
  %1359 = vmatpush.bf16.msra.mxu0 0
  %1360 = vmatpush.bf16.msra.mxu0 0
  %1361 = vmatpush.bf16.msra.mxu0 0
  %1362 = vmatpush.bf16.msra.mxu0 0
  %1363 = vmatpush.bf16.msra.mxu0 %v969
  %1364 = vmatpush.bf16.msra.mxu0 %v967
  %1365 = vmatpush.bf16.msra.mxu0 %v965
  %1366 = vmatpush.bf16.msra.mxu0 %v963
  %1367 = vmatmul.bf16.gmra.mxu0 %v1357
  %v1368 = vpop.f32.mrf.mxu0
  %v1369 = vadd.f32 0.0, %v1368
  %v1370 = vpop.f32.mrf.mxu0
  %1371 = vdwg.mxu0
  %1372 = vmatpush.bf16.msra.mxu0 0
  %1373 = vmatpush.bf16.msra.mxu0 0
  %1374 = vmatpush.bf16.msra.mxu0 0
  %1375 = vmatpush.bf16.msra.mxu0 0
  %1376 = vmatpush.bf16.msra.mxu0 %v970
  %1377 = vmatpush.bf16.msra.mxu0 %v968
  %1378 = vmatpush.bf16.msra.mxu0 %v966
  %1379 = vmatpush.bf16.msra.mxu0 %v964
  %1380 = vmatmul.bf16.gmra.mxu0 %v1357
  %v1381 = vpop.f32.mrf.mxu0
  %v1382 = vadd.f32 0.0, %v1381
  %v1383 = vpop.f32.mrf.mxu0
  %1384 = vdwg.mxu0
  %v1385 = vld [vmem:[#allocation2 + $0x70] sm:$0xff]
  %v1386 = vld [vmem:[#allocation2 + $0x78] sm:$0xff]
  %v1387 = vadd.f32 %v1385, %v1369
  %v1388 = vadd.f32 %v1386, %v1382
  %v1389 = vtanh.pop %v1387
  %v1390 = vtanh.pop %v1388
  %v1391 = vmul.f32 %v1389, 0.5
  %v1392 = vmul.f32 %v1390, 0.5
  %v1393 = vadd.f32 %v1391, 0.5
  %v1394 = vadd.f32 %v1392, 0.5
  %v1395 = vmul.f32 %v1393, %v1347
  %v1396 = vmul.f32 %v1393, %v1390
  %1398 = vrot.lane.b32.xlu0 %v1396, 64
  %v1399 = vpop.permute.xlu0 %1398
  %v1401 = vadd.f32 %v1395, %v1399
  %v1402 = vtanh.pop %v1401
  %v1403 = vmul.f32 %v1394, %v1402
  %1404 = vst.msk [vmem:[#allocation3 + $0x38] sm:$0xff] %vm1025, %v1403
  %1405 = vst.msk [vmem:[#allocation3] sm:$0xff] %vm1027, %v1403
  %v1406 = vld [vmem:[#allocation3] sm:$0xff]
  %v1407 = vld [vmem:[#allocation3 + $0x8] sm:$0xff]
  %v1408 = vld [vmem:[#allocation3 + $0x10] sm:$0xff]
  %v1409 = vld [vmem:[#allocation3 + $0x18] sm:$0xff]
  %v1410 = vld [vmem:[#allocation3 + $0x20] sm:$0xff]
  %v1411 = vld [vmem:[#allocation3 + $0x28] sm:$0xff]
  %v1412 = vld [vmem:[#allocation3 + $0x30] sm:$0xff]
  %v1413 = vld [vmem:[#allocation3 + $0x38] sm:$0xff]
  %v1414 = vpack.c.bf16 %v1407, %v1406
  %v1415 = vpack.c.bf16 %v1409, %v1408
  %v1416 = vpack.c.bf16 %v1411, %v1410
  %v1417 = vpack.c.bf16 %v1413, %v1412
  %v1418 = vld [vmem:[%s7] sm:$0xf]
  %v1419 = vld [vmem:[%s7 + $0x4] sm:$0xf]
  %v1420 = vld [vmem:[%s7 + $0x8] sm:$0xf]
  %v1421 = vld [vmem:[%s7 + $0xc] sm:$0xf]
  %v1422 = vld [vmem:[%s7 + $0x10] sm:$0xf]
  %v1423 = vld [vmem:[%s7 + $0x14] sm:$0xf]
  %v1424 = vld [vmem:[%s7 + $0x18] sm:$0xf]
  %v1425 = vld [vmem:[%s7 + $0x1c] sm:$0xf]
  %v1426 = vld [vmem:[%s7 + $0x20] sm:$0xf]
  %v1427 = vld [vmem:[%s7 + $0x24] sm:$0xf]
  %v1428 = vld [vmem:[%s7 + $0x28] sm:$0xf]
  %v1429 = vld [vmem:[%s7 + $0x2c] sm:$0xf]
  %v1430 = vld [vmem:[%s7 + $0x30] sm:$0xf]
  %v1431 = vld [vmem:[%s7 + $0x34] sm:$0xf]
  %v1432 = vld [vmem:[%s7 + $0x38] sm:$0xf]
  %v1433 = vld [vmem:[%s7 + $0x3c] sm:$0xf]
  %v1450 = vunpack.c.l.b16 %v1418
  %v1451 = vunpack.c.l.b16 %v1419
  %v1452 = vunpack.c.l.b16 %v1420
  %v1453 = vunpack.c.l.b16 %v1421
  %v1454 = vunpack.c.l.b16 %v1422
  %v1455 = vunpack.c.l.b16 %v1423
  %v1456 = vunpack.c.l.b16 %v1424
  %v1457 = vunpack.c.l.b16 %v1425
  %v1458 = vunpack.c.l.b16 %v1426
  %v1459 = vunpack.c.l.b16 %v1427
  %v1460 = vunpack.c.l.b16 %v1428
  %v1461 = vunpack.c.l.b16 %v1429
  %v1462 = vunpack.c.l.b16 %v1430
  %v1463 = vunpack.c.l.b16 %v1431
  %v1464 = vunpack.c.l.b16 %v1432
  %v1465 = vunpack.c.l.b16 %v1433
  %v1466 = vpack.c.b16 %v1451, %v1450
  %v1467 = vpack.c.b16 %v1453, %v1452
  %v1468 = vpack.c.b16 %v1455, %v1454
  %v1469 = vpack.c.b16 %v1457, %v1456
  %v1470 = vpack.c.b16 %v1459, %v1458
  %v1471 = vpack.c.b16 %v1461, %v1460
  %v1472 = vpack.c.b16 %v1463, %v1462
  %v1473 = vpack.c.b16 %v1465, %v1464
  %1482 = vmatpush.bf16.msra.mxu0 %v1473
  %1483 = vmatpush.bf16.msra.mxu0 %v1472
  %1484 = vmatpush.bf16.msra.mxu0 %v1471
  %1485 = vmatpush.bf16.msra.mxu0 %v1470
  %1486 = vmatpush.bf16.msra.mxu0 %v1469
  %1487 = vmatpush.bf16.msra.mxu0 %v1468
  %1488 = vmatpush.bf16.msra.mxu0 %v1467
  %1489 = vmatpush.bf16.msra.mxu0 %v1466
  %1490 = vmatmul.bf16.gmra.mxu0 %v1414
  %v1491 = vpop.f32.mrf.mxu0
  %v1492 = vadd.f32 0.0, %v1491
  %v1493 = vpop.f32.mrf.mxu0
  %v1494 = vadd.f32 0.0, %v1493
  %1495 = vmatmul.bf16.gmra.mxu0 %v1415
  %v1496 = vpop.f32.mrf.mxu0
  %v1497 = vadd.f32 0.0, %v1496
  %v1498 = vpop.f32.mrf.mxu0
  %v1499 = vadd.f32 0.0, %v1498
  %1500 = vmatmul.bf16.gmra.mxu0 %v1416
  %v1501 = vpop.f32.mrf.mxu0
  %v1502 = vadd.f32 0.0, %v1501
  %v1503 = vpop.f32.mrf.mxu0
  %v1504 = vadd.f32 0.0, %v1503
  %1505 = vmatmul.bf16.gmra.mxu0 %v1417
  %v1506 = vpop.f32.mrf.mxu0
  %v1507 = vadd.f32 0.0, %v1506
  %v1508 = vpop.f32.mrf.mxu0
  %v1509 = vadd.f32 0.0, %v1508
  %1510 = vdwg.mxu0
  %v1511 = vld [vmem:[%s8] sm:$0x1]
  %v1512 = vperm.slane %v1511, 0
  %v1513 = vmul.f32 %v1492, %v1512
  %v1514 = vmul.f32 %v1494, %v1512
  %v1515 = vmul.f32 %v1497, %v1512
  %v1516 = vmul.f32 %v1499, %v1512
  %v1517 = vmul.f32 %v1502, %v1512
  %v1518 = vmul.f32 %v1504, %v1512
  %v1519 = vmul.f32 %v1507, %v1512
  %v1520 = vmul.f32 %v1509, %v1512
  %v1521 = vld [vmem:[%s8 + $0x1] sm:$0x1]
  %v1522 = vperm.slane %v1521, 0
  %v1523 = vadd.f32 %v1513, %v1522
  %v1524 = vadd.f32 %v1514, %v1522
  %v1525 = vadd.f32 %v1515, %v1522
  %v1526 = vadd.f32 %v1516, %v1522
  %v1527 = vadd.f32 %v1517, %v1522
  %v1528 = vadd.f32 %v1518, %v1522
  %v1529 = vadd.f32 %v1519, %v1522
  %v1530 = vadd.f32 %v1520, %v1522
  %v1531 = vmax.f32 %v1523, 0.0
  %v1532 = vmax.f32 %v1524, 0.0
  %v1533 = vmax.f32 %v1525, 0.0
  %v1534 = vmax.f32 %v1526, 0.0
  %v1535 = vmax.f32 %v1527, 0.0
  %v1536 = vmax.f32 %v1528, 0.0
  %v1537 = vmax.f32 %v1529, 0.0
  %v1538 = vmax.f32 %v1530, 0.0
  %v1539 = vpack.c.bf16 %v1532, %v1531
  %v1540 = vpack.c.bf16 %v1534, %v1533
  %v1541 = vpack.c.bf16 %v1536, %v1535
  %v1542 = vpack.c.bf16 %v1538, %v1537
  %v1543 = vld [vmem:[%s9] sm:$0xf]
  %v1544 = vld [vmem:[%s9 + $0x4] sm:$0xf]
  %v1545 = vld [vmem:[%s9 + $0x8] sm:$0xf]
  %v1546 = vld [vmem:[%s9 + $0xc] sm:$0xf]
  %v1547 = vld [vmem:[%s9 + $0x10] sm:$0xf]
  %v1548 = vld [vmem:[%s9 + $0x14] sm:$0xf]
  %v1549 = vld [vmem:[%s9 + $0x18] sm:$0xf]
  %v1550 = vld [vmem:[%s9 + $0x1c] sm:$0xf]
  %v1551 = vld [vmem:[%s10] sm:$0x1]
  %v1553 = vperm.slane %v1551, 0
  %v1563 = vunpack.c.l.b16 %v1543
  %v1564 = vunpack.c.l.b16 %v1544
  %v1565 = vunpack.c.l.b16 %v1545
  %v1566 = vunpack.c.l.b16 %v1546
  %v1567 = vunpack.c.l.b16 %v1547
  %v1568 = vunpack.c.l.b16 %v1548
  %v1569 = vunpack.c.l.b16 %v1549
  %v1570 = vunpack.c.l.b16 %v1550
  %v1571 = vpack.c.b16 %v1564, %v1563
  %v1572 = vpack.c.b16 %v1566, %v1565
  %v1573 = vpack.c.b16 %v1568, %v1567
  %v1574 = vpack.c.b16 %v1570, %v1569
  %v1580 = vsel %vm268, %v1539, 0
  %v1583 = vsel %vm268, %v1540, 0
  %v1586 = vsel %vm268, %v1541, 0
  %v1589 = vsel %vm268, %v1542, 0
  %1591 = vmatpush.bf16.msra.mxu0 0
  %1592 = vmatpush.bf16.msra.mxu0 0
  %1593 = vmatpush.bf16.msra.mxu0 0
  %1594 = vmatpush.bf16.msra.mxu0 0
  %1595 = vmatpush.bf16.msra.mxu0 %v1574
  %1596 = vmatpush.bf16.msra.mxu0 %v1573
  %1597 = vmatpush.bf16.msra.mxu0 %v1572
  %1598 = vmatpush.bf16.msra.mxu0 %v1571
  %1599 = vmatmul.bf16.gmra.mxu0 %v1580
  %v1600 = vpop.f32.mrf.mxu0
  %v1601 = vadd.f32 %v1553, %v1600
  %v1602 = vpop.f32.mrf.mxu0
  %v1603 = vadd.f32 %v1553, %v1602
  %1604 = vmatmul.bf16.gmra.mxu0 %v1583
  %v1605 = vpop.f32.mrf.mxu0
  %v1606 = vadd.f32 %v1553, %v1605
  %v1607 = vpop.f32.mrf.mxu0
  %v1608 = vadd.f32 %v1553, %v1607
  %1609 = vmatmul.bf16.gmra.mxu0 %v1586
  %v1610 = vpop.f32.mrf.mxu0
  %v1611 = vadd.f32 %v1553, %v1610
  %v1612 = vpop.f32.mrf.mxu0
  %v1613 = vadd.f32 %v1553, %v1612
  %1614 = vmatmul.bf16.gmra.mxu0 %v1589
  %v1615 = vpop.f32.mrf.mxu0
  %v1616 = vadd.f32 %v1553, %v1615
  %v1617 = vpop.f32.mrf.mxu0
  %v1618 = vadd.f32 %v1553, %v1617
  %1619 = vdwg.mxu0
  %vm1620 = vcmask 64512
  %1621 = vst.msk [vmem:[%s12] sm:$0xff] %vm1620, %v1601
  %1622 = vst.msk [vmem:[%s12 + $0x8] sm:$0xff] %vm1620, %v1603
  %1623 = vst.msk [vmem:[%s12 + $0x10] sm:$0xff] %vm1620, %v1606
  %1624 = vst.msk [vmem:[%s12 + $0x18] sm:$0xff] %vm1620, %v1608
  %1625 = vst.msk [vmem:[%s12 + $0x20] sm:$0xff] %vm1620, %v1611
  %1626 = vst.msk [vmem:[%s12 + $0x28] sm:$0xff] %vm1620, %v1613
  %1627 = vst.msk [vmem:[%s12 + $0x30] sm:$0xff] %vm1620, %v1616
  %1628 = vst.msk [vmem:[%s12 + $0x38] sm:$0xff] %vm1620, %v1618
  // Predicated region
  $region50: #{pallas_forward.1} parent=0 // pred_check
    _
  $region51: #{pallas_forward.1} parent=0 // pred_check_branch
    %1630 = sbr.rel (0) target = $region53
  $region52: #{pallas_forward.1} parent=0 // pred_region
    _
  $region53: #{pallas_forward.1} parent=0 // pred_fallthru
    _
  // Predicated region
  $region54: #{pallas_forward.1} parent=0 // pred_check
    _
  $region55: #{pallas_forward.1} parent=0 // pred_check_branch
    %1632 = sbr.rel (0) target = $region57
  $region56: #{pallas_forward.1} parent=0 // pred_region
    _
  $region57: #{pallas_forward.1} parent=0 // pred_fallthru
    _

</llo_original>
